<compile_context>
chip_gen: v6e
topology: v6e:2x2x1
jax: 0.10.0
libtpu: 0.0.40
codegen_flags: <defaults>
</compile_context>

<pallas_src>
import math
import functools

import jax
import jax.numpy as jnp
from jax import lax
from jax.experimental import pallas as pl
from jax.experimental.pallas import tpu as pltpu


def _round_up(x, m):
    return (x + m - 1) // m * m


def _vmem_limit_bytes():
    # Generation-aware scoped-VMEM limit (~108 MiB on v5e/v6e, ~54 MiB on v7x).
    try:
        cap = pltpu.get_tpu_info().vmem_capacity_bytes
        return int(cap * 0.85)
    except Exception:
        return 48 * 1024 * 1024


def _default_max_tq():
    # Smaller query tiles on v7x (64 MiB VMEM); 256 rows fill the 256x256 MXU on v6e.
    try:
        cap = pltpu.get_tpu_info().vmem_capacity_bytes
        return 256 if cap >= 96 * 1024 * 1024 else 128
    except Exception:
        return 256


def _pick_query_tile(S, max_tq):
    """MXU-aligned (multiple-of-8) query tile; the tail is padded + masked in the wrapper."""
    if S <= max_tq:
        return _round_up(S, 8)
    if S % max_tq == 0:
        return max_tq
    for tq in (256, 128, 64, 32, 16, 8):
        if tq <= max_tq and (_round_up(S, tq) - S) * 8 <= S:
            return tq
    return 8


def _pick_kv_chunk(S_pad, max_tkv=512):
    """KV chunk length for the online-softmax path; full sequence when it is short."""
    if S_pad <= max_tkv:
        return S_pad
    for t in range(max_tkv, 127, -128):   # largest multiple-of-128 divisor, capped
        if S_pad % t == 0:
            return t
    return S_pad


def encoder_block_kernel(xq_ref, xs_ref,
                         wq_ref, wkv_ref, wo_ref, w1_ref, b1_ref, w2_ref,
                         pvec_ref,
                         o_ref,
                         k_scr, v_scr,
                         *, heads, compute_dtype, seq_len, n_kv_chunks, approx_gelu):
    # TODO(synk): attn_mask support not implemented (forward is called with attn_mask=None).
    # TODO(synk): dropout omitted (eval / inference semantics -> identity).
    cd = compute_dtype
    TQ, E = xq_ref.shape
    S_pad = xs_ref.shape[0]
    Dh = E // heads
    scale = 1.0 / math.sqrt(Dh)
    masked = S_pad > seq_len

    # Packed per-row f32 params: bq, bk, bv, bo, g1, beta1, b2, g2, beta2.
    row = lambda i: pvec_ref[i:i + 1, :]
    bq, bk, bv, bo = row(0), row(1), row(2), row(3)
    g1, beta1 = row(4), row(5)
    b2, g2, beta2 = row(6), row(7), row(8)

    # ---- K/V cache: fused (E,2E) projection of the whole slab, once per batch -----------
    @pl.when(pl.program_id(1) == 0)
    def _():
        xs = xs_ref[...]                                                   # (S_pad, E), cd
        kv = jnp.dot(xs, wkv_ref[...], preferred_element_type=jnp.float32)  # (S_pad, 2E) f32
        k_scr[...] = (kv[:, :E] + bk).astype(cd)
        v_scr[...] = (kv[:, E:] + bv).astype(cd)

    # ---- Q projection for this query tile -------------------------------------------------
    xq = xq_ref[...]                                                       # (TQ, E) f32 (residual)
    q = jnp.dot(xq.astype(cd), wq_ref[...], preferred_element_type=jnp.float32) + bq
    q = q * scale                                                          # fold 1/sqrt(Dh) into q
    qh = q.reshape(TQ, heads, Dh).astype(cd)
    # TODO(synk): for Dh < 128 the (TQ,E)<->(TQ,heads,Dh) reshapes may relayout across lanes;
    # revisit with pltpu.einshape at production head dims.

    # ---- multi-head attention (batched einsums; optional online softmax over KV chunks) ---
    if n_kv_chunks == 1:
        kh = k_scr[...].reshape(S_pad, heads, Dh)
        vh = v_scr[...].reshape(S_pad, heads, Dh)
        s = jnp.einsum("qhd,khd->hqk", qh, kh, preferred_element_type=jnp.float32)
        if masked:
            kidx = lax.broadcasted_iota(jnp.int32, s.shape, 2)
            s = jnp.where(kidx < seq_len, s, -jnp.inf)
        m = jnp.max(s, axis=-1, keepdims=True)
        p = jnp.exp(s - m)
        denom = jnp.sum(p, axis=-1, keepdims=True)
        p = p * pl.reciprocal(denom, approx=True)                           # EUP reciprocal
        ctx = jnp.einsum("hqk,khd->qhd", p.astype(cd), vh,
                         preferred_element_type=jnp.float32)
        ctx = ctx.reshape(TQ, E)
    else:
        TKV = S_pad // n_kv_chunks

        def body(c, carry):
            m_i, l_i, acc = carry
            off = pl.multiple_of(c * TKV, TKV)
            kc = k_scr[pl.ds(off, TKV), :].reshape(TKV, heads, Dh)
            vc = v_scr[pl.ds(off, TKV), :].reshape(TKV, heads, Dh)
            s = jnp.einsum("qhd,khd->hqk", qh, kc, preferred_element_type=jnp.float32)
            if masked:
                kidx = lax.broadcasted_iota(jnp.int32, s.shape, 2) + off
                s = jnp.where(kidx < seq_len, s, -jnp.inf)
            m_new = jnp.maximum(m_i, jnp.max(s, axis=-1, keepdims=True))
            alpha = jnp.exp(m_i - m_new)
            p = jnp.exp(s - m_new)
            l_new = alpha * l_i + jnp.sum(p, axis=-1, keepdims=True)
            acc_new = alpha * acc + jnp.einsum("hqk,khd->hqd", p.astype(cd), vc,
                                               preferred_element_type=jnp.float32)
            return m_new, l_new, acc_new

        m0 = jnp.full((heads, TQ, 1), -jnp.inf, jnp.float32)
        l0 = jnp.zeros((heads, TQ, 1), jnp.float32)
        a0 = jnp.zeros((heads, TQ, Dh), jnp.float32)
        _, l_f, acc = lax.fori_loop(0, n_kv_chunks, body, (m0, l0, a0))
        ctx = acc * pl.reciprocal(l_f, approx=True)                          # (heads, TQ, Dh)
        ctx = jnp.transpose(ctx, (1, 0, 2)).reshape(TQ, E)

    attn = jnp.dot(ctx.astype(cd), wo_ref[...], preferred_element_type=jnp.float32) + bo

    # ---- residual + LayerNorm 1 (f32 VPU math) ---------------------------------------------
    h1 = xq + attn
    mu1 = jnp.mean(h1, axis=-1, keepdims=True)
    var1 = jnp.mean((h1 - mu1) ** 2, axis=-1, keepdims=True)
    h1n = (h1 - mu1) * lax.rsqrt(var1 + 1e-5) * g1 + beta1

    # ---- feed-forward: Linear -> GELU -> Linear ----------------------------------------------
    f = jnp.dot(h1n.astype(cd), w1_ref[...], preferred_element_type=jnp.float32) + b1_ref[...]
    if approx_gelu:
        c0 = math.sqrt(2.0 / math.pi)
        f = 0.5 * f * (1.0 + jnp.tanh(c0 * (f + 0.044715 * f * f * f)))      # EUP tanh
    else:
        f = 0.5 * f * (1.0 + lax.erf(f * (1.0 / math.sqrt(2.0))))            # PyTorch GELU parity
    f = jnp.dot(f.astype(cd), w2_ref[...], preferred_element_type=jnp.float32) + b2

    # ---- residual + LayerNorm 2 --------------------------------------------------------------
    h2 = h1n + f
    mu2 = jnp.mean(h2, axis=-1, keepdims=True)
    var2 = jnp.mean((h2 - mu2) ** 2, axis=-1, keepdims=True)
    out = (h2 - mu2) * lax.rsqrt(var2 + 1e-5) * g2 + beta2

    o_ref[...] = out.astype(o_ref.dtype)


def encoder_block(x, params, heads, *, compute_dtype=jnp.bfloat16, tq=None,
                  max_kv_chunk=512, approx_gelu=False):
    B, S, E = x.shape
    F = params["w1"].shape[1]
    assert E % heads == 0, "embed_dim must be divisible by heads"

    TQ = tq if tq is not None else _pick_query_tile(S, _default_max_tq())
    TQ = max(8, _round_up(TQ, 8))
    S_pad = _round_up(S, TQ)
    TKV = _pick_kv_chunk(S_pad, max_kv_chunk)
    n_kv = S_pad // TKV

    x_in = jnp.pad(x, ((0, 0), (0, S_pad - S), (0, 0))) if S_pad != S else x
    xs_cd = x_in.astype(compute_dtype)        # K/V slab in compute dtype (half the DMA for bf16)

    # Split fused QKV: Q weight separate, K/V weights fused into one (E, 2E) matmul.
    wq = params["wqkv"][:, :E]
    wkv = params["wqkv"][:, E:]
    bqkv = params["bqkv"][0]                  # (3E,)
    # Packed (9, E) per-row params: bq, bk, bv, bo, g1, beta1, b2, g2, beta2.
    pvec = jnp.stack([
        bqkv[:E], bqkv[E:2 * E], bqkv[2 * E:],
        params["bo"][0], params["g1"][0], params["beta1"][0],
        params["b2"][0], params["g2"][0], params["beta2"][0],
    ], axis=0).astype(jnp.float32)

    wd = lambda w: w.astype(compute_dtype)    # weights DMA'd in compute dtype (bf16 default)

    def wspec(shape):
        # Constant index_map: block never changes across the grid -> stays resident (no re-DMA).
        return pl.BlockSpec(shape, lambda b, q, _n=len(shape): (0,) * _n)

    kernel = functools.partial(encoder_block_kernel, heads=heads, compute_dtype=compute_dtype,
                               seq_len=S, n_kv_chunks=n_kv, approx_gelu=approx_gelu)

    out = pl.pallas_call(
        kernel,
        out_shape=jax.ShapeDtypeStruct((B, S_pad, E), x.dtype),
        grid=(B, S_pad // TQ),
        in_specs=[
            pl.BlockSpec((pl.Squeezed(), TQ, E), lambda b, q: (b, q, 0)),     # f32 query tile
            pl.BlockSpec((pl.Squeezed(), S_pad, E), lambda b, q: (b, 0, 0)),  # cd K/V slab (per batch)
            wspec((E, E)),        # wq
            wspec((E, 2 * E)),    # wkv (fused K/V weight)
            wspec((E, E)),        # wo
            wspec((E, F)),        # w1
            wspec((1, F)),        # b1
            wspec((F, E)),        # w2
            wspec((9, E)),        # packed biases / LayerNorm params
        ],
        out_specs=pl.BlockSpec((pl.Squeezed(), TQ, E), lambda b, q: (b, q, 0)),
        scratch_shapes=[
            pltpu.VMEM((S_pad, E), compute_dtype),    # K cache (recomputed at q tile 0 of each batch)
            pltpu.VMEM((S_pad, E), compute_dtype),    # V cache
        ],
        compiler_params=pltpu.CompilerParams(
            dimension_semantics=("parallel", "arbitrary"),   # b across cores, q sequential (KV cache)
            vmem_limit_bytes=_vmem_limit_bytes(),
        ),
    )(x_in, xs_cd,
      wd(wq), wd(wkv), wd(params["wo"]), wd(params["w1"]), params["b1"],
      wd(params["w2"]), pvec)

    return out[:, :S, :] if S_pad != S else out


def encoder_block_ref(x, params, heads):
    """Pure-JAX f32 reference mirroring the PyTorch forward (eval mode)."""
    B, S, E = x.shape
    Dh = E // heads
    qkv = x @ params["wqkv"] + params["bqkv"][0]
    q, k, v = jnp.split(qkv, 3, axis=-1)
    sh = lambda t: t.reshape(B, S, heads, Dh).transpose(0, 2, 1, 3)
    q, k, v = sh(q), sh(k), sh(v)
    s = jnp.einsum("bhqd,bhkd->bhqk", q, k) / math.sqrt(Dh)
    p = jax.nn.softmax(s, axis=-1)
    ctx = jnp.einsum("bhqk,bhkd->bhqd", p, v).transpose(0, 2, 1, 3).reshape(B, S, E)
    attn = ctx @ params["wo"] + params["bo"][0]

    def ln(t, g, b):
        mu = t.mean(-1, keepdims=True)
        var = ((t - mu) ** 2).mean(-1, keepdims=True)
        return (t - mu) / jnp.sqrt(var + 1e-5) * g[0] + b[0]

    h1 = ln(x + attn, params["g1"], params["beta1"])
    f = h1 @ params["w1"] + params["b1"][0]
    f = 0.5 * f * (1.0 + lax.erf(f / math.sqrt(2.0)))
    f = f @ params["w2"] + params["b2"][0]
    return ln(h1 + f, params["g2"], params["beta2"])


def init_params(key, embed_dim, ff_dim):
    ks = jax.random.split(key, 8)
    n = lambda k, shp: (0.05 * jax.random.normal(k, shp)).astype(jnp.float32)
    return {
        "wqkv": n(ks[0], (embed_dim, 3 * embed_dim)),
        "bqkv": n(ks[1], (1, 3 * embed_dim)),
        "wo": n(ks[2], (embed_dim, embed_dim)),
        "bo": n(ks[3], (1, embed_dim)),
        "g1": jnp.ones((1, embed_dim), jnp.float32),
        "beta1": jnp.zeros((1, embed_dim), jnp.float32),
        "w1": n(ks[4], (embed_dim, ff_dim)),
        "b1": n(ks[5], (1, ff_dim)),
        "w2": n(ks[6], (ff_dim, embed_dim)),
        "b2": n(ks[7], (1, embed_dim)),
        "g2": jnp.ones((1, embed_dim), jnp.float32),
        "beta2": jnp.zeros((1, embed_dim), jnp.float32),
    }


if __name__ == "__main__":
    B, S, E, HEADS, FF = 2, 8, 32, 4, 64
    key = jax.random.PRNGKey(0)
    kx, kx2, kp = jax.random.split(key, 3)
    x = jax.random.normal(kx, (B, S, E), dtype=jnp.float32)
    params = init_params(kp, E, FF)

    ref = encoder_block_ref(x, params, HEADS)

    # f32-operand path: structural/numerical check (approx reciprocal in softmax -> loose tol).
    out_f32 = jax.block_until_ready(encoder_block(x, params, HEADS, compute_dtype=jnp.float32))
    assert out_f32.shape == (B, S, E)
    assert jnp.allclose(out_f32, ref, atol=2e-2, rtol=2e-2), "f32 path mismatch vs JAX reference"

    # Default production path: bf16 MXU operands, f32 accumulation.
    out_bf16 = jax.block_until_ready(encoder_block(x, params, HEADS))
    assert out_bf16.shape == (B, S, E)
    assert jnp.allclose(out_bf16, ref, atol=6e-2, rtol=6e-2), "bf16 path mismatch vs JAX reference"

    # Non-multiple-of-8 sequence: exercises the pad + key-mask path (S=12 -> padded to 16).
    S2 = 12
    x2 = jax.random.normal(kx2, (B, S2, E), dtype=jnp.float32)
    ref2 = encoder_block_ref(x2, params, HEADS)
    out2 = jax.block_until_ready(encoder_block(x2, params, HEADS, compute_dtype=jnp.float32))
    assert out2.shape == (B, S2, E)
    assert jnp.allclose(out2, ref2, atol=2e-2, rtol=2e-2), "padded/masked path mismatch"

    print("KERNEL_OK")
</pallas_src>

<mosaic_0001>
module attributes {stable_mosaic.version = 11 : i64} {
  func.func @encoder_block_kernel(%arg0: i32, %arg1: i32, %arg2: memref<1x8x32xf32, #tpu.memory_space<vmem>>, %arg3: memref<1x8x32xf32, #tpu.memory_space<vmem>>, %arg4: memref<32x32xf32, #tpu.memory_space<vmem>>, %arg5: memref<32x64xf32, #tpu.memory_space<vmem>>, %arg6: memref<32x32xf32, #tpu.memory_space<vmem>>, %arg7: memref<32x64xf32, #tpu.memory_space<vmem>>, %arg8: memref<1x64xf32, #tpu.memory_space<vmem>>, %arg9: memref<64x32xf32, #tpu.memory_space<vmem>>, %arg10: memref<9x32xf32, #tpu.memory_space<vmem>>, %arg11: memref<1x8x32xf32, #tpu.memory_space<vmem>>, %arg12: memref<8x32xf32, #tpu.memory_space<vmem>>, %arg13: memref<8x32xf32, #tpu.memory_space<vmem>>) attributes {dimension_semantics = [#tpu.dimension_semantics<parallel>, #tpu.dimension_semantics<arbitrary>], iteration_bounds = array<i64: 2, 1>, scalar_prefetch = 0 : i64, scratch_operands = 2 : i64, tpu.core_type = #tpu.core_type<tc>, window_params = [{transform_indices = @transform_0, window_bounds = array<i64: 1, 8, 32>}, {transform_indices = @transform_1, window_bounds = array<i64: 1, 8, 32>}, {pipeline_mode = #tpu.pipeline_mode<synchronous>, transform_indices = @transform_2, window_bounds = array<i64: 32, 32>}, {pipeline_mode = #tpu.pipeline_mode<synchronous>, transform_indices = @transform_3, window_bounds = array<i64: 32, 64>}, {pipeline_mode = #tpu.pipeline_mode<synchronous>, transform_indices = @transform_4, window_bounds = array<i64: 32, 32>}, {pipeline_mode = #tpu.pipeline_mode<synchronous>, transform_indices = @transform_5, window_bounds = array<i64: 32, 64>}, {pipeline_mode = #tpu.pipeline_mode<synchronous>, transform_indices = @transform_6, window_bounds = array<i64: 1, 64>}, {pipeline_mode = #tpu.pipeline_mode<synchronous>, transform_indices = @transform_7, window_bounds = array<i64: 64, 32>}, {pipeline_mode = #tpu.pipeline_mode<synchronous>, transform_indices = @transform_8, window_bounds = array<i64: 9, 32>}, {transform_indices = @transform_9, window_bounds = array<i64: 1, 8, 32>}]} {
    %c0 = arith.constant 0 : index
    %c0_0 = arith.constant 0 : index
    %0 = vector.load %arg10[%c0, %c0_0] : memref<9x32xf32, #tpu.memory_space<vmem>>, vector<1x32xf32>
    %c1 = arith.constant 1 : index
    %c0_1 = arith.constant 0 : index
    %1 = vector.load %arg10[%c1, %c0_1] : memref<9x32xf32, #tpu.memory_space<vmem>>, vector<1x32xf32>
    %c2 = arith.constant 2 : index
    %c0_2 = arith.constant 0 : index
    %2 = vector.load %arg10[%c2, %c0_2] : memref<9x32xf32, #tpu.memory_space<vmem>>, vector<1x32xf32>
    %c3 = arith.constant 3 : index
    %c0_3 = arith.constant 0 : index
    %3 = vector.load %arg10[%c3, %c0_3] : memref<9x32xf32, #tpu.memory_space<vmem>>, vector<1x32xf32>
    %c4 = arith.constant 4 : index
    %c0_4 = arith.constant 0 : index
    %4 = vector.load %arg10[%c4, %c0_4] : memref<9x32xf32, #tpu.memory_space<vmem>>, vector<1x32xf32>
    %c5 = arith.constant 5 : index
    %c0_5 = arith.constant 0 : index
    %5 = vector.load %arg10[%c5, %c0_5] : memref<9x32xf32, #tpu.memory_space<vmem>>, vector<1x32xf32>
    %c6 = arith.constant 6 : index
    %c0_6 = arith.constant 0 : index
    %6 = vector.load %arg10[%c6, %c0_6] : memref<9x32xf32, #tpu.memory_space<vmem>>, vector<1x32xf32>
    %c7 = arith.constant 7 : index
    %c0_7 = arith.constant 0 : index
    %7 = vector.load %arg10[%c7, %c0_7] : memref<9x32xf32, #tpu.memory_space<vmem>>, vector<1x32xf32>
    %c8 = arith.constant 8 : index
    %c0_8 = arith.constant 0 : index
    %8 = vector.load %arg10[%c8, %c0_8] : memref<9x32xf32, #tpu.memory_space<vmem>>, vector<1x32xf32>
    %c0_i32 = arith.constant 0 : i32
    %9 = arith.cmpi eq, %arg1, %c0_i32 : i32
    %10 = arith.extui %9 : i1 to i32
    %c0_i32_9 = arith.constant 0 : i32
    %11 = arith.cmpi ne, %10, %c0_i32_9 : i32
    scf.if %11 {
      %c0_51 = arith.constant 0 : index
      %c0_52 = arith.constant 0 : index
      %c0_53 = arith.constant 0 : index
      %109 = vector.load %arg3[%c0_51, %c0_52, %c0_53] : memref<1x8x32xf32, #tpu.memory_space<vmem>>, vector<1x8x32xf32>
      %110 = vector.shape_cast %109 : vector<1x8x32xf32> to vector<8x32xf32>
      %c0_54 = arith.constant 0 : index
      %c0_55 = arith.constant 0 : index
      %111 = vector.load %arg5[%c0_54, %c0_55] : memref<32x64xf32, #tpu.memory_space<vmem>>, vector<32x64xf32>
      %cst_56 = arith.constant dense<0.000000e+00> : vector<8x64xf32>
      %112 = tpu.matmul %110, %111, %cst_56 {dimension_numbers = #tpu.dot_dimension_numbers<[1], [0], [0], [1], [0, 0, 1, 1], [], []>} : vector<8x32xf32>, vector<32x64xf32>, vector<8x64xf32> -> vector<8x64xf32>
      %113 = vector.extract_strided_slice %112 {offsets = [0, 0], sizes = [8, 32], strides = [1, 1]} : vector<8x64xf32> to vector<8x32xf32>
      %114 = vector.broadcast %1 : vector<1x32xf32> to vector<8x32xf32>
      %115 = arith.addf %113, %114 : vector<8x32xf32>
      %c0_57 = arith.constant 0 : index
      %c0_58 = arith.constant 0 : index
      %116 = vector.load %arg12[%c0_57, %c0_58] : memref<8x32xf32, #tpu.memory_space<vmem>>, vector<8x32xf32>
      tpu.vector_store %arg12[%c0_57, %c0_58], %115 {strides = array<i32>} : memref<8x32xf32, #tpu.memory_space<vmem>>, vector<8x32xf32>,
      %117 = vector.extract_strided_slice %112 {offsets = [0, 32], sizes = [8, 32], strides = [1, 1]} : vector<8x64xf32> to vector<8x32xf32>
      %118 = vector.broadcast %2 : vector<1x32xf32> to vector<8x32xf32>
      %119 = arith.addf %117, %118 : vector<8x32xf32>
      %c0_59 = arith.constant 0 : index
      %c0_60 = arith.constant 0 : index
      %120 = vector.load %arg13[%c0_59, %c0_60] : memref<8x32xf32, #tpu.memory_space<vmem>>, vector<8x32xf32>
      tpu.vector_store %arg13[%c0_59, %c0_60], %119 {strides = array<i32>} : memref<8x32xf32, #tpu.memory_space<vmem>>, vector<8x32xf32>,
    } else {
    }
    %c0_10 = arith.constant 0 : index
    %c0_11 = arith.constant 0 : index
    %c0_12 = arith.constant 0 : index
    %12 = vector.load %arg2[%c0_10, %c0_11, %c0_12] : memref<1x8x32xf32, #tpu.memory_space<vmem>>, vector<1x8x32xf32>
    %13 = vector.shape_cast %12 : vector<1x8x32xf32> to vector<8x32xf32>
    %c0_13 = arith.constant 0 : index
    %c0_14 = arith.constant 0 : index
    %14 = vector.load %arg4[%c0_13, %c0_14] : memref<32x32xf32, #tpu.memory_space<vmem>>, vector<32x32xf32>
    %cst = arith.constant dense<0.000000e+00> : vector<8x32xf32>
    %15 = tpu.matmul %13, %14, %cst {dimension_numbers = #tpu.dot_dimension_numbers<[1], [0], [0], [1], [0, 0, 1, 1], [], []>} : vector<8x32xf32>, vector<32x32xf32>, vector<8x32xf32> -> vector<8x32xf32>
    %16 = vector.broadcast %0 : vector<1x32xf32> to vector<8x32xf32>
    %17 = arith.addf %15, %16 : vector<8x32xf32>
    %cst_15 = arith.constant 0.353553385 : f32
    %18 = vector.broadcast %cst_15 : f32 to vector<8x32xf32>
    %19 = arith.mulf %17, %18 : vector<8x32xf32>
    %20 = vector.shape_cast %19 : vector<8x32xf32> to vector<8x4x8xf32>
    %c0_16 = arith.constant 0 : index
    %c0_17 = arith.constant 0 : index
    %21 = vector.load %arg12[%c0_16, %c0_17] : memref<8x32xf32, #tpu.memory_space<vmem>>, vector<8x32xf32>
    %22 = vector.shape_cast %21 : vector<8x32xf32> to vector<8x4x8xf32>
    %c0_18 = arith.constant 0 : index
    %c0_19 = arith.constant 0 : index
    %23 = vector.load %arg13[%c0_18, %c0_19] : memref<8x32xf32, #tpu.memory_space<vmem>>, vector<8x32xf32>
    %24 = vector.shape_cast %23 : vector<8x32xf32> to vector<8x4x8xf32>
    "tpu.trace_start"() <{level = 10 : i32, message = "qhd,khd->hqk"}> : () -> ()
    %cst_20 = arith.constant dense<0.000000e+00> : vector<4x8x8xf32>
    %25 = tpu.matmul %20, %22, %cst_20 {dimension_numbers = #tpu.dot_dimension_numbers<[2], [2], [0], [0], [0, 1, 0, 0, 1, 0], [1], [1]>} : vector<8x4x8xf32>, vector<8x4x8xf32>, vector<4x8x8xf32> -> vector<4x8x8xf32>
    "tpu.trace_stop"() : () -> ()
    %cst_21 = arith.constant dense<0xFF800000> : vector<4x8xf32>
    %26 = vector.multi_reduction <maximumf>, %25, %cst_21 [2] : vector<4x8x8xf32> to vector<4x8xf32>
    %27 = vector.shape_cast %26 : vector<4x8xf32> to vector<4x8x1xf32>
    %28 = vector.broadcast %27 : vector<4x8x1xf32> to vector<4x8x8xf32>
    %29 = arith.subf %25, %28 : vector<4x8x8xf32>
    %30 = math.exp %29 : vector<4x8x8xf32>
    %cst_22 = arith.constant dense<0.000000e+00> : vector<4x8xf32>
    %31 = vector.multi_reduction <add>, %30, %cst_22 [2] : vector<4x8x8xf32> to vector<4x8xf32>
    %32 = vector.shape_cast %31 : vector<4x8xf32> to vector<4x8x1xf32>
    %33 = tpu.reciprocal %32 {approx = true} : vector<4x8x1xf32> -> vector<4x8x1xf32>
    %34 = vector.broadcast %33 : vector<4x8x1xf32> to vector<4x8x8xf32>
    %35 = arith.mulf %30, %34 : vector<4x8x8xf32>
    "tpu.trace_start"() <{level = 10 : i32, message = "hqk,khd->qhd"}> : () -> ()
    %cst_23 = arith.constant dense<0.000000e+00> : vector<4x8x8xf32>
    %36 = tpu.matmul %24, %35, %cst_23 {dimension_numbers = #tpu.dot_dimension_numbers<[0], [2], [2], [1], [0, 1, 0, 2, 1, 1], [1], [0]>} : vector<8x4x8xf32>, vector<4x8x8xf32>, vector<4x8x8xf32> -> vector<4x8x8xf32>
    %37 = tpu.transpose %36, [2, 0, 1] : vector<4x8x8xf32> -> vector<8x4x8xf32>
    "tpu.trace_stop"() : () -> ()
    %38 = vector.shape_cast %37 : vector<8x4x8xf32> to vector<8x32xf32>
    %c0_24 = arith.constant 0 : index
    %c0_25 = arith.constant 0 : index
    %39 = vector.load %arg6[%c0_24, %c0_25] : memref<32x32xf32, #tpu.memory_space<vmem>>, vector<32x32xf32>
    %cst_26 = arith.constant dense<0.000000e+00> : vector<8x32xf32>
    %40 = tpu.matmul %38, %39, %cst_26 {dimension_numbers = #tpu.dot_dimension_numbers<[1], [0], [0], [1], [0, 0, 1, 1], [], []>} : vector<8x32xf32>, vector<32x32xf32>, vector<8x32xf32> -> vector<8x32xf32>
    %41 = vector.broadcast %3 : vector<1x32xf32> to vector<8x32xf32>
    %42 = arith.addf %40, %41 : vector<8x32xf32>
    %43 = arith.addf %13, %42 : vector<8x32xf32>
    %cst_27 = arith.constant dense<0.000000e+00> : vector<8xf32>
    %44 = vector.multi_reduction <add>, %43, %cst_27 [1] : vector<8x32xf32> to vector<8xf32>
    %45 = vector.shape_cast %44 : vector<8xf32> to vector<8x1xf32>
    %cst_28 = arith.constant 3.200000e+01 : f32
    %46 = vector.broadcast %cst_28 : f32 to vector<8x1xf32>
    %47 = arith.divf %45, %46 : vector<8x1xf32>
    %48 = vector.broadcast %47 : vector<8x1xf32> to vector<8x32xf32>
    %49 = arith.subf %43, %48 : vector<8x32xf32>
    %50 = arith.mulf %49, %49 : vector<8x32xf32>
    %cst_29 = arith.constant dense<0.000000e+00> : vector<8xf32>
    %51 = vector.multi_reduction <add>, %50, %cst_29 [1] : vector<8x32xf32> to vector<8xf32>
    %52 = vector.shape_cast %51 : vector<8xf32> to vector<8x1xf32>
    %cst_30 = arith.constant 3.200000e+01 : f32
    %53 = vector.broadcast %cst_30 : f32 to vector<8x1xf32>
    %54 = arith.divf %52, %53 : vector<8x1xf32>
    %55 = vector.broadcast %47 : vector<8x1xf32> to vector<8x32xf32>
    %56 = arith.subf %43, %55 : vector<8x32xf32>
    %cst_31 = arith.constant 9.99999974E-6 : f32
    %57 = vector.broadcast %cst_31 : f32 to vector<8x1xf32>
    %58 = arith.addf %54, %57 : vector<8x1xf32>
    %59 = math.rsqrt %58 : vector<8x1xf32>
    %60 = vector.broadcast %59 : vector<8x1xf32> to vector<8x32xf32>
    %61 = arith.mulf %56, %60 : vector<8x32xf32>
    %62 = vector.broadcast %4 : vector<1x32xf32> to vector<8x32xf32>
    %63 = arith.mulf %61, %62 : vector<8x32xf32>
    %64 = vector.broadcast %5 : vector<1x32xf32> to vector<8x32xf32>
    %65 = arith.addf %63, %64 : vector<8x32xf32>
    %c0_32 = arith.constant 0 : index
    %c0_33 = arith.constant 0 : index
    %66 = vector.load %arg7[%c0_32, %c0_33] : memref<32x64xf32, #tpu.memory_space<vmem>>, vector<32x64xf32>
    %cst_34 = arith.constant dense<0.000000e+00> : vector<8x64xf32>
    %67 = tpu.matmul %65, %66, %cst_34 {dimension_numbers = #tpu.dot_dimension_numbers<[1], [0], [0], [1], [0, 0, 1, 1], [], []>} : vector<8x32xf32>, vector<32x64xf32>, vector<8x64xf32> -> vector<8x64xf32>
    %c0_35 = arith.constant 0 : index
    %c0_36 = arith.constant 0 : index
    %68 = vector.load %arg8[%c0_35, %c0_36] : memref<1x64xf32, #tpu.memory_space<vmem>>, vector<1x64xf32>
    %69 = vector.broadcast %68 : vector<1x64xf32> to vector<8x64xf32>
    %70 = arith.addf %67, %69 : vector<8x64xf32>
    %cst_37 = arith.constant 5.000000e-01 : f32
    %71 = vector.broadcast %cst_37 : f32 to vector<8x64xf32>
    %72 = arith.mulf %71, %70 : vector<8x64xf32>
    %cst_38 = arith.constant 0.707106769 : f32
    %73 = vector.broadcast %cst_38 : f32 to vector<8x64xf32>
    %74 = arith.mulf %70, %73 : vector<8x64xf32>
    %75 = math.erf %74 : vector<8x64xf32>
    %cst_39 = arith.constant 1.000000e+00 : f32
    %76 = vector.broadcast %cst_39 : f32 to vector<8x64xf32>
    %77 = arith.addf %76, %75 : vector<8x64xf32>
    %78 = arith.mulf %72, %77 : vector<8x64xf32>
    %c0_40 = arith.constant 0 : index
    %c0_41 = arith.constant 0 : index
    %79 = vector.load %arg9[%c0_40, %c0_41] : memref<64x32xf32, #tpu.memory_space<vmem>>, vector<64x32xf32>
    %cst_42 = arith.constant dense<0.000000e+00> : vector<8x32xf32>
    %80 = tpu.matmul %78, %79, %cst_42 {dimension_numbers = #tpu.dot_dimension_numbers<[1], [0], [0], [1], [0, 0, 1, 1], [], []>} : vector<8x64xf32>, vector<64x32xf32>, vector<8x32xf32> -> vector<8x32xf32>
    %81 = vector.broadcast %6 : vector<1x32xf32> to vector<8x32xf32>
    %82 = arith.addf %80, %81 : vector<8x32xf32>
    %83 = arith.addf %65, %82 : vector<8x32xf32>
    %cst_43 = arith.constant dense<0.000000e+00> : vector<8xf32>
    %84 = vector.multi_reduction <add>, %83, %cst_43 [1] : vector<8x32xf32> to vector<8xf32>
    %85 = vector.shape_cast %84 : vector<8xf32> to vector<8x1xf32>
    %cst_44 = arith.constant 3.200000e+01 : f32
    %86 = vector.broadcast %cst_44 : f32 to vector<8x1xf32>
    %87 = arith.divf %85, %86 : vector<8x1xf32>
    %88 = vector.broadcast %87 : vector<8x1xf32> to vector<8x32xf32>
    %89 = arith.subf %83, %88 : vector<8x32xf32>
    %90 = arith.mulf %89, %89 : vector<8x32xf32>
    %cst_45 = arith.constant dense<0.000000e+00> : vector<8xf32>
    %91 = vector.multi_reduction <add>, %90, %cst_45 [1] : vector<8x32xf32> to vector<8xf32>
    %92 = vector.shape_cast %91 : vector<8xf32> to vector<8x1xf32>
    %cst_46 = arith.constant 3.200000e+01 : f32
    %93 = vector.broadcast %cst_46 : f32 to vector<8x1xf32>
    %94 = arith.divf %92, %93 : vector<8x1xf32>
    %95 = vector.broadcast %87 : vector<8x1xf32> to vector<8x32xf32>
    %96 = arith.subf %83, %95 : vector<8x32xf32>
    %cst_47 = arith.constant 9.99999974E-6 : f32
    %97 = vector.broadcast %cst_47 : f32 to vector<8x1xf32>
    %98 = arith.addf %94, %97 : vector<8x1xf32>
    %99 = math.rsqrt %98 : vector<8x1xf32>
    %100 = vector.broadcast %99 : vector<8x1xf32> to vector<8x32xf32>
    %101 = arith.mulf %96, %100 : vector<8x32xf32>
    %102 = vector.broadcast %7 : vector<1x32xf32> to vector<8x32xf32>
    %103 = arith.mulf %101, %102 : vector<8x32xf32>
    %104 = vector.broadcast %8 : vector<1x32xf32> to vector<8x32xf32>
    %105 = arith.addf %103, %104 : vector<8x32xf32>
    %c0_48 = arith.constant 0 : index
    %c0_49 = arith.constant 0 : index
    %c0_50 = arith.constant 0 : index
    %106 = vector.load %arg11[%c0_48, %c0_49, %c0_50] : memref<1x8x32xf32, #tpu.memory_space<vmem>>, vector<1x8x32xf32>
    %107 = vector.shape_cast %106 : vector<1x8x32xf32> to vector<8x32xf32>
    %108 = vector.shape_cast %105 : vector<8x32xf32> to vector<1x8x32xf32>
    tpu.vector_store %arg11[%c0_48, %c0_49, %c0_50], %108 {strides = array<i32>} : memref<1x8x32xf32, #tpu.memory_space<vmem>>, vector<1x8x32xf32>,
    return
  }
  func.func @transform_0(%arg0: i32, %arg1: i32) -> (i32, i32, i32) {
    %c0_i32 = arith.constant 0 : i32
    %c0_i32_0 = arith.constant 0 : i32
    return %arg0, %arg1, %c0_i32 : i32, i32, i32
  }
  func.func @transform_1(%arg0: i32, %arg1: i32) -> (i32, i32, i32) {
    %c0_i32 = arith.constant 0 : i32
    %c0_i32_0 = arith.constant 0 : i32
    %c0_i32_1 = arith.constant 0 : i32
    return %arg0, %c0_i32, %c0_i32_0 : i32, i32, i32
  }
  func.func @transform_2(%arg0: i32, %arg1: i32) -> (i32, i32) {
    %c0_i32 = arith.constant 0 : i32
    %c0_i32_0 = arith.constant 0 : i32
    %c0_i32_1 = arith.constant 0 : i32
    return %c0_i32, %c0_i32_0 : i32, i32
  }
  func.func @transform_3(%arg0: i32, %arg1: i32) -> (i32, i32) {
    %c0_i32 = arith.constant 0 : i32
    %c0_i32_0 = arith.constant 0 : i32
    %c0_i32_1 = arith.constant 0 : i32
    return %c0_i32, %c0_i32_0 : i32, i32
  }
  func.func @transform_4(%arg0: i32, %arg1: i32) -> (i32, i32) {
    %c0_i32 = arith.constant 0 : i32
    %c0_i32_0 = arith.constant 0 : i32
    %c0_i32_1 = arith.constant 0 : i32
    return %c0_i32, %c0_i32_0 : i32, i32
  }
  func.func @transform_5(%arg0: i32, %arg1: i32) -> (i32, i32) {
    %c0_i32 = arith.constant 0 : i32
    %c0_i32_0 = arith.constant 0 : i32
    %c0_i32_1 = arith.constant 0 : i32
    return %c0_i32, %c0_i32_0 : i32, i32
  }
  func.func @transform_6(%arg0: i32, %arg1: i32) -> (i32, i32) {
    %c0_i32 = arith.constant 0 : i32
    %c0_i32_0 = arith.constant 0 : i32
    %c0_i32_1 = arith.constant 0 : i32
    return %c0_i32, %c0_i32_0 : i32, i32
  }
  func.func @transform_7(%arg0: i32, %arg1: i32) -> (i32, i32) {
    %c0_i32 = arith.constant 0 : i32
    %c0_i32_0 = arith.constant 0 : i32
    %c0_i32_1 = arith.constant 0 : i32
    return %c0_i32, %c0_i32_0 : i32, i32
  }
  func.func @transform_8(%arg0: i32, %arg1: i32) -> (i32, i32) {
    %c0_i32 = arith.constant 0 : i32
    %c0_i32_0 = arith.constant 0 : i32
    %c0_i32_1 = arith.constant 0 : i32
    return %c0_i32, %c0_i32_0 : i32, i32
  }
  func.func @transform_9(%arg0: i32, %arg1: i32) -> (i32, i32, i32) {
    %c0_i32 = arith.constant 0 : i32
    %c0_i32_0 = arith.constant 0 : i32
    return %arg0, %arg1, %c0_i32 : i32, i32, i32
  }
}

</mosaic_0001>

<llo_original>
// kernel: tpu_custom_call.1
$region0: #{tpu_custom_call.1}
  #allocation0 [shape = 'u32[]', space=smem, size = 0x4, offset = 0x4, fixed_abs, tag = 'smem constant byte address 0x4 - core index']
  #allocation1 [shape = 'u32[144,128]{1,0:T(1,128)}', space=vmem, size = 0x12000, scoped, tag = 'internal scratch']
  #allocation2 [shape = 'f32[8,32]{1,0:T(8,128)}', space=vmem, size = 0x1000, scoped, tag = 'scratch operand']
  #allocation3 [shape = 'f32[8,32]{1,0:T(8,128)}', space=vmem, size = 0x1000, scoped, tag = 'scratch operand']
  %s0 = inlined_call_operand.hbm [shape: f32[2,8,32], index: 0, kind: input, shape index: {}]
  %s1 = inlined_call_operand.hbm [shape: f32[2,8,32], index: 1, kind: input, shape index: {}]
  %s2 = inlined_call_operand.vmem [shape: f32[32,32], index: 2, kind: input, shape index: {}]
  %s3 = inlined_call_operand.vmem [shape: f32[32,64], index: 3, kind: input, shape index: {}]
  %s4 = inlined_call_operand.vmem [shape: f32[32,32], index: 4, kind: input, shape index: {}]
  %s5 = inlined_call_operand.hbm [shape: f32[32,64], index: 5, kind: input, shape index: {}]
  %s6 = inlined_call_operand.vmem [shape: f32[1,64], index: 6, kind: input, shape index: {}]
  %s7 = inlined_call_operand.vmem [shape: f32[64,32], index: 7, kind: input, shape index: {}]
  %s8 = inlined_call_operand.hbm [shape: f32[9,32], index: 8, kind: input, shape index: {}]
  %s9 = inlined_call_operand.hbm [shape: f32[2,8,32], index: 9, kind: output, shape index: {}]
  %s10 = sld [smem:[#allocation0]]
  $region89: #{tpu_custom_call.1} parent=0
    _
  %s12 = ssub.s32 1, %s10
  %s13 = scalar_select 0, %s12, %s10
  $region1: #{tpu_custom_call.1} parent=0
    #allocation4 [shape = 'u8[8192]{0}', space=vmem, size = 0x2000, scoped, tag = 'input window, operand 0']
    #allocation5 [shape = 's32[2]{0}', space=sflag, size = 0x8, scoped, tag = 'scoped memory for tpu_custom_call.1']
    #allocation6 [shape = 's32[2]{0}', space=sflag, size = 0x8, scoped, tag = 'scoped memory for tpu_custom_call.1']
    #allocation7 [shape = 'u8[8192]{0}', space=vmem, size = 0x2000, scoped, tag = 'input window, operand 1']
    #allocation8 [shape = 's32[2]{0}', space=sflag, size = 0x8, scoped, tag = 'scoped memory for tpu_custom_call.1']
    #allocation9 [shape = 'u8[16384]{0}', space=vmem, size = 0x4000, scoped, tag = 'input window, operand 5, single buffered']
    #allocation10 [shape = 'u8[8192]{0}', space=vmem, size = 0x2000, scoped, tag = 'input window, operand 8, single buffered']
    #allocation11 [shape = 's32[1]{0}', space=sflag, size = 0x4, scoped, tag = 'scoped memory for tpu_custom_call.1']
    #allocation12 [shape = 'u8[8192]{0}', space=vmem, size = 0x2000, scoped, tag = 'output window, operand 0']
    %14 = vsyncpa [#allocation5], 0
    %s15 = scalar_lea.sflag [#allocation5], 1
    %16 = vsyncpa %s15, 0
    %17 = vsyncpa [#allocation8], 0
    %s18 = scalar_lea.sflag [#allocation8], 1
    %19 = vsyncpa %s18, 0
    %20 = vsyncpa [#allocation11], 0
    %21 = vsyncpa [#allocation6], 0
    %s22 = scalar_lea.sflag [#allocation6], 1
    %23 = vsyncpa %s22, 0
    loop: start=0, step=1, limit=4
    $region2: #{tpu_custom_call.1} parent=1 // loop_pre_header
      _
    $region3: #{tpu_custom_call.1} parent=1 // loop_header
      %s25 = sphi 0, %s29
      %p26 = scmp.ge.s32.totalorder %s25, 4
      %s32 = sphi 0, %s44
      %s33 = sphi 0, %s40
      %s34 = sphi 0, %s32
      %s35 = sphi 0, %s33
      %s36 = sphi 0, %s34
      %s37 = sphi 0, %s35
      %s49 = sphi 0, %s51
      %s52 = sphi 0, %s49
      %s53 = sphi 0, %s52
      %s69 = sphi 0, %s53
      %s75 = sphi 0, %s77
      %s78 = sphi 0, %s75
      %s79 = sphi 0, %s78
      %s95 = sphi 0, %s79
      %s99 = sphi 0, %s99
      %s101 = sphi 0, %s99
      %s102 = sphi 0, %s101
      %s116 = sphi 0, %s102
      %s120 = sphi 0, %s120
      %s122 = sphi 0, %s120
      %s123 = sphi 0, %s122
      %s137 = sphi 0, %s123
      %s141 = sphi 0, %s141
      %s143 = sphi 0, %s141
      %s144 = sphi 0, %s143
      %s158 = sphi 0, %s144
      %s162 = sphi 0, %s162
      %s164 = sphi 0, %s162
      %s165 = sphi 0, %s164
      %s179 = sphi 0, %s165
      %s183 = sphi 0, %s183
      %s185 = sphi 0, %s183
      %s186 = sphi 0, %s185
      %s200 = sphi 0, %s186
      %s204 = sphi 0, %s204
      %s206 = sphi 0, %s204
      %s207 = sphi 0, %s206
      %s221 = sphi 0, %s207
      %s225 = sphi 0, %s225
      %s227 = sphi 0, %s225
      %s228 = sphi 0, %s227
      %s242 = sphi 0, %s228
      %s250 = sphi 0, %s252
      %s253 = sphi 0, %s250
      %s254 = sphi 0, %s253
      %s270 = sphi 0, %s254
    $region4: #{tpu_custom_call.1} parent=1 // loop_header_branch
      %28 = sbr.rel (%p26) target = $region8
    $region5: #{tpu_custom_call.1} parent=1 // loop_body
      %s30 = ssub.s32 %s25, 1
      %s31 = ssub.s32 %s25, 2
      %s38 = sadd.s32 1, %s33
      %p39 = scmp.ge.s32.totalorder %s38, 1
      %s40 = scalar_select %p39, 0, %s38
      %s41 = sadd.s32 1, %s32
      %s42 = scalar_select %p39, %s41, %s32
      %p43 = scmp.ge.s32.totalorder %s42, 2
      %s44 = scalar_select %p43, 0, %s42
      %s45 = ssub.s32 %s32, %s44
      %s46 = ssub.s32 %s33, %s40
      %s47 = sor.u32 %s45, %s46
      %p48 = scmp.eq.s32.totalorder %s47, 0
      %s50 = sadd.s32 %s49, 1
      %s51 = scalar_select %p48, %s49, %s50
      %p54 = pneg %p48
      %p55 = scmp.eq.s32.totalorder %s25, 1
      %p56 = por %p54, %p55
      %p57 = scmp.ne.s32.totalorder %s49, %s52
      %p58 = scmp.eq.s32.totalorder %s25, 0
      %p59 = por %p57, %p58
      %p60 = scmp.ne.s32.totalorder %s49, %s52
      %p61 = scmp.eq.s32.totalorder %s30, 1
      %p62 = por %p60, %p61
      %p63 = scmp.ne.s32.totalorder %s52, %s53
      %p64 = scmp.eq.s32.totalorder %s30, 0
      %p65 = por %p63, %p64
      %p66 = scmp.ne.s32.totalorder %s52, %s53
      %p67 = scmp.eq.s32.totalorder %s31, 1
      %p68 = por %p66, %p67
      %p70 = scmp.ne.s32.totalorder %s53, %s69
      %p71 = scmp.eq.s32.totalorder %s31, 0
      %p72 = por %p70, %p71
      %s73 = ssub.s32 %s32, %s44
      %p74 = scmp.eq.s32.totalorder %s73, 0
      %s76 = sadd.s32 %s75, 1
      %s77 = scalar_select %p74, %s75, %s76
      %p80 = pneg %p74
      %p81 = scmp.eq.s32.totalorder %s25, 1
      %p82 = por %p80, %p81
      %p83 = scmp.ne.s32.totalorder %s75, %s78
      %p84 = scmp.eq.s32.totalorder %s25, 0
      %p85 = por %p83, %p84
      %p86 = scmp.ne.s32.totalorder %s75, %s78
      %p87 = scmp.eq.s32.totalorder %s30, 1
      %p88 = por %p86, %p87
      %p89 = scmp.ne.s32.totalorder %s78, %s79
      %p90 = scmp.eq.s32.totalorder %s30, 0
      %p91 = por %p89, %p90
      %p92 = scmp.ne.s32.totalorder %s78, %s79
      %p93 = scmp.eq.s32.totalorder %s31, 1
      %p94 = por %p92, %p93
      %p96 = scmp.ne.s32.totalorder %s79, %s95
      %p97 = scmp.eq.s32.totalorder %s31, 0
      %p98 = por %p96, %p97
      %s100 = sadd.s32 %s99, 1
      %p103 = scmp.eq.s32.totalorder %s25, 1
      %p104 = scmp.ne.s32.totalorder %s99, %s101
      %p105 = scmp.eq.s32.totalorder %s25, 0
      %p106 = por %p104, %p105
      %p107 = scmp.ne.s32.totalorder %s99, %s101
      %p108 = scmp.eq.s32.totalorder %s30, 1
      %p109 = por %p107, %p108
      %p110 = scmp.ne.s32.totalorder %s101, %s102
      %p111 = scmp.eq.s32.totalorder %s30, 0
      %p112 = por %p110, %p111
      %p113 = scmp.ne.s32.totalorder %s101, %s102
      %p114 = scmp.eq.s32.totalorder %s31, 1
      %p115 = por %p113, %p114
      %p117 = scmp.ne.s32.totalorder %s102, %s116
      %p118 = scmp.eq.s32.totalorder %s31, 0
      %p119 = por %p117, %p118
      %s121 = sadd.s32 %s120, 1
      %p124 = scmp.eq.s32.totalorder %s25, 1
      %p125 = scmp.ne.s32.totalorder %s120, %s122
      %p126 = scmp.eq.s32.totalorder %s25, 0
      %p127 = por %p125, %p126
      %p128 = scmp.ne.s32.totalorder %s120, %s122
      %p129 = scmp.eq.s32.totalorder %s30, 1
      %p130 = por %p128, %p129
      %p131 = scmp.ne.s32.totalorder %s122, %s123
      %p132 = scmp.eq.s32.totalorder %s30, 0
      %p133 = por %p131, %p132
      %p134 = scmp.ne.s32.totalorder %s122, %s123
      %p135 = scmp.eq.s32.totalorder %s31, 1
      %p136 = por %p134, %p135
      %p138 = scmp.ne.s32.totalorder %s123, %s137
      %p139 = scmp.eq.s32.totalorder %s31, 0
      %p140 = por %p138, %p139
      %s142 = sadd.s32 %s141, 1
      %p145 = scmp.eq.s32.totalorder %s25, 1
      %p146 = scmp.ne.s32.totalorder %s141, %s143
      %p147 = scmp.eq.s32.totalorder %s25, 0
      %p148 = por %p146, %p147
      %p149 = scmp.ne.s32.totalorder %s141, %s143
      %p150 = scmp.eq.s32.totalorder %s30, 1
      %p151 = por %p149, %p150
      %p152 = scmp.ne.s32.totalorder %s143, %s144
      %p153 = scmp.eq.s32.totalorder %s30, 0
      %p154 = por %p152, %p153
      %p155 = scmp.ne.s32.totalorder %s143, %s144
      %p156 = scmp.eq.s32.totalorder %s31, 1
      %p157 = por %p155, %p156
      %p159 = scmp.ne.s32.totalorder %s144, %s158
      %p160 = scmp.eq.s32.totalorder %s31, 0
      %p161 = por %p159, %p160
      %s163 = sadd.s32 %s162, 1
      %p166 = scmp.eq.s32.totalorder %s25, 1
      %p167 = scmp.ne.s32.totalorder %s162, %s164
      %p168 = scmp.eq.s32.totalorder %s25, 0
      %p169 = por %p167, %p168
      %p170 = scmp.ne.s32.totalorder %s162, %s164
      %p171 = scmp.eq.s32.totalorder %s30, 1
      %p172 = por %p170, %p171
      %p173 = scmp.ne.s32.totalorder %s164, %s165
      %p174 = scmp.eq.s32.totalorder %s30, 0
      %p175 = por %p173, %p174
      %p176 = scmp.ne.s32.totalorder %s164, %s165
      %p177 = scmp.eq.s32.totalorder %s31, 1
      %p178 = por %p176, %p177
      %p180 = scmp.ne.s32.totalorder %s165, %s179
      %p181 = scmp.eq.s32.totalorder %s31, 0
      %p182 = por %p180, %p181
      %s184 = sadd.s32 %s183, 1
      %p187 = scmp.eq.s32.totalorder %s25, 1
      %p188 = scmp.ne.s32.totalorder %s183, %s185
      %p189 = scmp.eq.s32.totalorder %s25, 0
      %p190 = por %p188, %p189
      %p191 = scmp.ne.s32.totalorder %s183, %s185
      %p192 = scmp.eq.s32.totalorder %s30, 1
      %p193 = por %p191, %p192
      %p194 = scmp.ne.s32.totalorder %s185, %s186
      %p195 = scmp.eq.s32.totalorder %s30, 0
      %p196 = por %p194, %p195
      %p197 = scmp.ne.s32.totalorder %s185, %s186
      %p198 = scmp.eq.s32.totalorder %s31, 1
      %p199 = por %p197, %p198
      %p201 = scmp.ne.s32.totalorder %s186, %s200
      %p202 = scmp.eq.s32.totalorder %s31, 0
      %p203 = por %p201, %p202
      %s205 = sadd.s32 %s204, 1
      %p208 = scmp.eq.s32.totalorder %s25, 1
      %p209 = scmp.ne.s32.totalorder %s204, %s206
      %p210 = scmp.eq.s32.totalorder %s25, 0
      %p211 = por %p209, %p210
      %p212 = scmp.ne.s32.totalorder %s204, %s206
      %p213 = scmp.eq.s32.totalorder %s30, 1
      %p214 = por %p212, %p213
      %p215 = scmp.ne.s32.totalorder %s206, %s207
      %p216 = scmp.eq.s32.totalorder %s30, 0
      %p217 = por %p215, %p216
      %p218 = scmp.ne.s32.totalorder %s206, %s207
      %p219 = scmp.eq.s32.totalorder %s31, 1
      %p220 = por %p218, %p219
      %p222 = scmp.ne.s32.totalorder %s207, %s221
      %p223 = scmp.eq.s32.totalorder %s31, 0
      %p224 = por %p222, %p223
      %s226 = sadd.s32 %s225, 1
      %p229 = scmp.eq.s32.totalorder %s25, 1
      %p230 = scmp.ne.s32.totalorder %s225, %s227
      %p231 = scmp.eq.s32.totalorder %s25, 0
      %p232 = por %p230, %p231
      %p233 = scmp.ne.s32.totalorder %s225, %s227
      %p234 = scmp.eq.s32.totalorder %s30, 1
      %p235 = por %p233, %p234
      %p236 = scmp.ne.s32.totalorder %s227, %s228
      %p237 = scmp.eq.s32.totalorder %s30, 0
      %p238 = por %p236, %p237
      %p239 = scmp.ne.s32.totalorder %s227, %s228
      %p240 = scmp.eq.s32.totalorder %s31, 1
      %p241 = por %p239, %p240
      %p243 = scmp.ne.s32.totalorder %s228, %s242
      %p244 = scmp.eq.s32.totalorder %s31, 0
      %p245 = por %p243, %p244
      %s246 = ssub.s32 %s32, %s44
      %s247 = ssub.s32 %s33, %s40
      %s248 = sor.u32 %s246, %s247
      %p249 = scmp.eq.s32.totalorder %s248, 0
      %s251 = sadd.s32 %s250, 1
      %s252 = scalar_select %p249, %s250, %s251
      %p255 = pneg %p249
      %p256 = scmp.eq.s32.totalorder %s25, 1
      %p257 = por %p255, %p256
      %p258 = scmp.ne.s32.totalorder %s250, %s253
      %p259 = scmp.eq.s32.totalorder %s25, 0
      %p260 = por %p258, %p259
      %p261 = scmp.ne.s32.totalorder %s250, %s253
      %p262 = scmp.eq.s32.totalorder %s30, 1
      %p263 = por %p261, %p262
      %p264 = scmp.ne.s32.totalorder %s253, %s254
      %p265 = scmp.eq.s32.totalorder %s30, 0
      %p266 = por %p264, %p265
      %p267 = scmp.ne.s32.totalorder %s253, %s254
      %p268 = scmp.eq.s32.totalorder %s31, 1
      %p269 = por %p267, %p268
      %p271 = scmp.ne.s32.totalorder %s254, %s270
      %p272 = scmp.eq.s32.totalorder %s31, 0
      %p273 = por %p271, %p272
      %p274 = scmp.le.s32.totalorder 1, %s25
      %p275 = scmp.lt.s32.totalorder %s25, 3
      %p276 = pnand %p274, %p275
      %p277 = pneg %p276
      // Predicated region
      $region9: #{tpu_custom_call.1} parent=5 // pred_check
        _
      $region10: #{tpu_custom_call.1} parent=5 // pred_check_branch
        %279 = sbr.rel (%p276) target = $region12
      $region11: #{tpu_custom_call.1} parent=5 // pred_region
        %s280 = ssub.s32 %s25, 1
        // Predicated region
        $region13: #{tpu_custom_call.1} parent=11 // pred_check
          %p281 = pneg %p112
        $region14: #{tpu_custom_call.1} parent=11 // pred_check_branch
          %283 = sbr.rel (%p281) target = $region16
        $region15: #{tpu_custom_call.1} parent=11 // pred_region
          _
        $region16: #{tpu_custom_call.1} parent=11 // pred_fallthru
          _
        // Predicated region
        $region17: #{tpu_custom_call.1} parent=11 // pred_check
          %p284 = pneg %p133
        $region18: #{tpu_custom_call.1} parent=11 // pred_check_branch
          %286 = sbr.rel (%p284) target = $region20
        $region19: #{tpu_custom_call.1} parent=11 // pred_region
          _
        $region20: #{tpu_custom_call.1} parent=11 // pred_fallthru
          _
        // Predicated region
        $region21: #{tpu_custom_call.1} parent=11 // pred_check
          %p287 = pneg %p154
        $region22: #{tpu_custom_call.1} parent=11 // pred_check_branch
          %289 = sbr.rel (%p287) target = $region24
        $region23: #{tpu_custom_call.1} parent=11 // pred_region
          _
        $region24: #{tpu_custom_call.1} parent=11 // pred_fallthru
          _
        // Predicated region
        $region25: #{tpu_custom_call.1} parent=11 // pred_check
          %p290 = pneg %p175
        $region26: #{tpu_custom_call.1} parent=11 // pred_check_branch
          %292 = sbr.rel (%p290) target = $region28
        $region27: #{tpu_custom_call.1} parent=11 // pred_region
          %s294 = ssub.s32 512, 512
          %295 = vsyncadd [#allocation8], %s294
          %s296 = sshll.u32 [#allocation9], 4
          %s297 = int_to_ptr.vmem [resolvable:$true] %s296
          %302 = dma.hbm_to_vmem [thread:$0]  %s5, 512, %s297, [#allocation8], 128, 128, 8
        $region28: #{tpu_custom_call.1} parent=11 // pred_fallthru
          _
        // Predicated region
        $region29: #{tpu_custom_call.1} parent=11 // pred_check
          %p303 = pneg %p196
        $region30: #{tpu_custom_call.1} parent=11 // pred_check_branch
          %305 = sbr.rel (%p303) target = $region32
        $region31: #{tpu_custom_call.1} parent=11 // pred_region
          _
        $region32: #{tpu_custom_call.1} parent=11 // pred_fallthru
          _
        // Predicated region
        $region33: #{tpu_custom_call.1} parent=11 // pred_check
          %p306 = pneg %p217
        $region34: #{tpu_custom_call.1} parent=11 // pred_check_branch
          %308 = sbr.rel (%p306) target = $region36
        $region35: #{tpu_custom_call.1} parent=11 // pred_region
          _
        $region36: #{tpu_custom_call.1} parent=11 // pred_fallthru
          _
        // Predicated region
        $region37: #{tpu_custom_call.1} parent=11 // pred_check
          %p309 = pneg %p238
        $region38: #{tpu_custom_call.1} parent=11 // pred_check_branch
          %311 = sbr.rel (%p309) target = $region40
        $region39: #{tpu_custom_call.1} parent=11 // pred_region
          %s313 = ssub.s32 256, 256
          %314 = vsyncadd [#allocation11], %s313
          %s315 = sshll.u32 [#allocation10], 4
          %s316 = int_to_ptr.vmem [resolvable:$true] %s315
          %321 = dma.hbm_to_vmem [thread:$0]  %s8, 256, %s316, [#allocation11], 128, 128, 8
        $region40: #{tpu_custom_call.1} parent=11 // pred_fallthru
          _
      $region12: #{tpu_custom_call.1} parent=5 // pred_fallthru
        _
      %p322 = scmp.lt.s32.totalorder %s25, 2
      // Predicated region
      $region41: #{tpu_custom_call.1} parent=5 // pred_check
        %p323 = pneg %p322
      $region42: #{tpu_custom_call.1} parent=5 // pred_check_branch
        %325 = sbr.rel (%p323) target = $region44
      $region43: #{tpu_custom_call.1} parent=5 // pred_region
        // Predicated region
        $region45: #{tpu_custom_call.1} parent=43 // pred_check
          %p326 = pneg %p59
        $region46: #{tpu_custom_call.1} parent=43 // pred_check_branch
          %328 = sbr.rel (%p326) target = $region48
        $region47: #{tpu_custom_call.1} parent=43 // pred_region
          %s329 = sand.u32 %s49, 1
          %s330 = scalar_lea.sflag [#allocation5], %s329
          %s331 = sand.u32 %s49, 1
          %s332 = smul.addr %s331, 8
          %s333 = scalar_lea.vmem [#allocation4], %s332
          %s335 = ssub.s32 128, 128
          %336 = vsyncadd %s330, %s335
          %s337 = sadd.s32 %s33, %s32
          %s338 = smul.addr %s337, 128
          %s339 = scalar_lea.hbm %s0, %s338
          %s341 = sshll.u32 %s333, 4
          %s342 = int_to_ptr.vmem [resolvable:$true] %s341
          %344 = dma.hbm_to_vmem [thread:$0]  %s339, 128, %s342, %s330
        $region48: #{tpu_custom_call.1} parent=43 // pred_fallthru
          _
        // Predicated region
        $region49: #{tpu_custom_call.1} parent=43 // pred_check
          %p345 = pneg %p85
        $region50: #{tpu_custom_call.1} parent=43 // pred_check_branch
          %347 = sbr.rel (%p345) target = $region52
        $region51: #{tpu_custom_call.1} parent=43 // pred_region
          %s348 = sand.u32 %s25, 1
          %s349 = scalar_lea.sflag [#allocation8], %s348
          %s350 = sand.u32 %s75, 1
          %s351 = smul.addr %s350, 8
          %s352 = scalar_lea.vmem [#allocation7], %s351
          %s354 = ssub.s32 128, 128
          %355 = vsyncadd %s349, %s354
          %s356 = smul.addr %s32, 128
          %s357 = scalar_lea.hbm %s1, %s356
          %s359 = sshll.u32 %s352, 4
          %s360 = int_to_ptr.vmem [resolvable:$true] %s359
          %362 = dma.hbm_to_vmem [thread:$0]  %s357, 128, %s360, %s349
        $region52: #{tpu_custom_call.1} parent=43 // pred_fallthru
          _
      $region44: #{tpu_custom_call.1} parent=5 // pred_fallthru
        _
      %p363 = scmp.le.s32.totalorder 1, %s25
      %p364 = scmp.lt.s32.totalorder %s25, 3
      %p365 = pnand %p363, %p364
      %p366 = pneg %p365
      // Predicated region
      $region53: #{tpu_custom_call.1} parent=5 // pred_check
        _
      $region54: #{tpu_custom_call.1} parent=5 // pred_check_branch
        %368 = sbr.rel (%p365) target = $region56
      $region55: #{tpu_custom_call.1} parent=5 // pred_region
        %s369 = ssub.s32 %s25, 1
        %s370 = sand.u32 %s52, 1
        %s371 = scalar_lea.sflag [#allocation5], %s370
        %s372 = sand.u32 %s52, 1
        %s373 = smul.addr %s372, 8
        %s374 = scalar_lea.vmem [#allocation4], %s373
        // Predicated region
        $region57: #{tpu_custom_call.1} parent=55 // pred_check
          %p375 = pneg %p65
        $region58: #{tpu_custom_call.1} parent=55 // pred_check_branch
          %377 = sbr.rel (%p375) target = $region60
        $region59: #{tpu_custom_call.1} parent=55 // pred_region
          %378 = dma.done %s371, 128
        $region60: #{tpu_custom_call.1} parent=55 // pred_fallthru
          _
        %s379 = sand.u32 %s30, 1
        %s380 = scalar_lea.sflag [#allocation8], %s379
        %s381 = sand.u32 %s78, 1
        %s382 = smul.addr %s381, 8
        %s383 = scalar_lea.vmem [#allocation7], %s382
        // Predicated region
        $region61: #{tpu_custom_call.1} parent=55 // pred_check
          %p384 = pneg %p91
        $region62: #{tpu_custom_call.1} parent=55 // pred_check_branch
          %386 = sbr.rel (%p384) target = $region64
        $region63: #{tpu_custom_call.1} parent=55 // pred_region
          %387 = dma.done %s380, 128
        $region64: #{tpu_custom_call.1} parent=55 // pred_fallthru
          _
        // Predicated region
        $region65: #{tpu_custom_call.1} parent=55 // pred_check
          %p388 = pneg %p175
        $region66: #{tpu_custom_call.1} parent=55 // pred_check_branch
          %390 = sbr.rel (%p388) target = $region68
        $region67: #{tpu_custom_call.1} parent=55 // pred_region
          %391 = dma.done [#allocation8], 512
        $region68: #{tpu_custom_call.1} parent=55 // pred_fallthru
          _
        // Predicated region
        $region69: #{tpu_custom_call.1} parent=55 // pred_check
          %p392 = pneg %p238
        $region70: #{tpu_custom_call.1} parent=55 // pred_check_branch
          %394 = sbr.rel (%p392) target = $region72
        $region71: #{tpu_custom_call.1} parent=55 // pred_region
          %395 = dma.done [#allocation11], 256
        $region72: #{tpu_custom_call.1} parent=55 // pred_fallthru
          _
        %s396 = sand.u32 %s52, 1
        %s397 = scalar_lea.sflag [#allocation5], %s396
        %s398 = sand.u32 %s52, 1
        %s399 = smul.addr %s398, 8
        %s400 = scalar_lea.vmem [#allocation4], %s399
        %p401 = pneg %p65
        %p402 = pneg %p62
        %s403 = sand.u32 %s30, 1
        %s404 = scalar_lea.sflag [#allocation8], %s403
        %s405 = sand.u32 %s78, 1
        %s406 = smul.addr %s405, 8
        %s407 = scalar_lea.vmem [#allocation7], %s406
        %p408 = pneg %p91
        %p409 = pneg %p88
        %p410 = pneg %p112
        %p411 = pneg %p109
        %p412 = pneg %p133
        %p413 = pneg %p130
        %p414 = pneg %p154
        %p415 = pneg %p151
        %p416 = pneg %p175
        %p417 = pneg %p172
        %p418 = pneg %p196
        %p419 = pneg %p193
        %p420 = pneg %p217
        %p421 = pneg %p214
        %p422 = pneg %p238
        %p423 = pneg %p235
        %p424 = pneg %p266
        %p425 = pneg %p263
        %s426 = sand.u32 %s253, 1
        %s427 = scalar_lea.sflag [#allocation6], %s426
        %s428 = sand.u32 %s253, 1
        %s429 = smul.addr %s428, 8
        %s430 = scalar_lea.vmem [#allocation12], %s429
        %v431 = vld [vmem:[#allocation10] sm:$0x1]
        %v432 = vld [vmem:[#allocation10 + $0x1] sm:$0x1]
        %v433 = vld [vmem:[#allocation10 + $0x2] sm:$0x1]
        %v434 = vld [vmem:[#allocation10 + $0x3] sm:$0x1]
        %v435 = vld [vmem:[#allocation10 + $0x4] sm:$0x1]
        %v436 = vld [vmem:[#allocation10 + $0x5] sm:$0x1]
        %v437 = vld [vmem:[#allocation10 + $0x6] sm:$0x1]
        %v438 = vld [vmem:[#allocation10 + $0x7] sm:$0x1]
        %v439 = vld [vmem:[#allocation10 + $0x8] sm:$0x1]
        %p440 = scmp.eq.s32.totalorder %s35, 0
        // Predicated region
        $region73: #{tpu_custom_call.1} parent=55 // pred_check
          %p441 = pneg %p440
        $region74: #{tpu_custom_call.1} parent=55 // pred_check_branch
          %443 = sbr.rel (%p441) target = $region76
        $region75: #{tpu_custom_call.1} parent=55 // pred_region
          %v444 = vld [vmem:[%s383] sm:$0xff]
          %v445 = vld [vmem:[%s3] sm:$0xff]
          %v446 = vld [vmem:[%s3 + $0x8] sm:$0xff]
          %v447 = vld [vmem:[%s3 + $0x10] sm:$0xff]
          %v448 = vld [vmem:[%s3 + $0x18] sm:$0xff]
          %vm449 = vcmask 261120
          %v451 = vsel %vm449, %v444, 0
          %453 = vmatprep.subr.mxu0 0.0
          %454 = vmatpush1.msra.mxu0 0.0
          %455 = vmatprep.subr.mxu0 0.0
          %456 = vmatpush1.msra.mxu0 0.0
          %457 = vmatprep.subr.mxu0 0.0
          %458 = vmatpush1.msra.mxu0 0.0
          %459 = vmatprep.subr.mxu0 0.0
          %460 = vmatpush1.msra.mxu0 0.0
          %461 = vmatprep.subr.mxu0 0.0
          %462 = vmatpush1.msra.mxu0 0.0
          %463 = vmatprep.subr.mxu0 0.0
          %464 = vmatpush1.msra.mxu0 0.0
          %465 = vmatprep.subr.mxu0 0.0
          %466 = vmatpush1.msra.mxu0 0.0
          %467 = vmatprep.subr.mxu0 0.0
          %468 = vmatpush1.msra.mxu0 0.0
          %469 = vmatprep.subr.mxu0 0.0
          %470 = vmatpush1.msra.mxu0 0.0
          %471 = vmatprep.subr.mxu0 0.0
          %472 = vmatpush1.msra.mxu0 0.0
          %473 = vmatprep.subr.mxu0 0.0
          %474 = vmatpush1.msra.mxu0 0.0
          %475 = vmatprep.subr.mxu0 0.0
          %476 = vmatpush1.msra.mxu0 0.0
          %477 = vmatprep.subr.mxu0 0.0
          %478 = vmatpush1.msra.mxu0 %v448
          %479 = vmatprep.subr.mxu0 0.0
          %480 = vmatpush1.msra.mxu0 %v447
          %481 = vmatprep.subr.mxu0 0.0
          %482 = vmatpush1.msra.mxu0 %v446
          %483 = vmatprep.subr.mxu0 0.0
          %484 = vmatpush1.msra.mxu0 %v445
          %485 = vmatprep.subr.mxu0 0.0
          %486 = vmatpush2.msra.mxu0 0.0
          %487 = vmatprep.subr.mxu0 0.0
          %488 = vmatpush2.msra.mxu0 0.0
          %489 = vmatprep.subr.mxu0 0.0
          %490 = vmatpush2.msra.mxu0 0.0
          %491 = vmatprep.subr.mxu0 0.0
          %492 = vmatpush2.msra.mxu0 0.0
          %493 = vmatprep.subr.mxu0 0.0
          %494 = vmatpush2.msra.mxu0 0.0
          %495 = vmatprep.subr.mxu0 0.0
          %496 = vmatpush2.msra.mxu0 0.0
          %497 = vmatprep.subr.mxu0 0.0
          %498 = vmatpush2.msra.mxu0 0.0
          %499 = vmatprep.subr.mxu0 0.0
          %500 = vmatpush2.msra.mxu0 0.0
          %501 = vmatprep.subr.mxu0 0.0
          %502 = vmatpush2.msra.mxu0 0.0
          %503 = vmatprep.subr.mxu0 0.0
          %504 = vmatpush2.msra.mxu0 0.0
          %505 = vmatprep.subr.mxu0 0.0
          %506 = vmatpush2.msra.mxu0 0.0
          %507 = vmatprep.subr.mxu0 0.0
          %508 = vmatpush2.msra.mxu0 0.0
          %509 = vmatprep.subr.mxu0 0.0
          %510 = vmatpush2.msra.mxu0 0.0
          %511 = vmatprep.subr.mxu0 0.0
          %512 = vmatpush2.msra.mxu0 0.0
          %513 = vmatprep.subr.mxu0 0.0
          %514 = vmatpush2.msra.mxu0 0.0
          %515 = vmatprep.subr.mxu0 0.0
          %516 = vmatpush2.msra.mxu0 0.0
          %517 = vmatprep.mubr.f32.mxu0 0.0
          %518 = vmatmul.mubr.f32.gmra.mxu0 %v451
          %v519 = vpop.f32.mrf.mxu0
          %v520 = vadd.f32 0.0, %v519
          %v521 = vpop.f32.mrf.mxu0
          %522 = vdwg.mxu0
          %v523 = vlaneseq
          %v524 = vshrl.u32 %v523, 7
          %v525 = vsub.s32 0, %v524
          %v526 = vrot.slane %v432, %v525
          %v527 = vadd.f32 %v520, %v526
          %528 = vst.msk [vmem:[#allocation2] sm:$0xff] %vm449, %v527
          %v529 = vlaneseq
          %v530 = vshrl.u32 %v529, 7
          %v531 = vsub.s32 0, %v530
          %v532 = vrot.slane %v433, %v531
          %534 = vrot.lane.b32.xlu0 %v532, 32
          %v535 = vpop.permute.xlu0 %534
          %v537 = vadd.f32 %v520, %v535
          %539 = vrot.lane.b32.xlu0 %v537, 96
          %v540 = vpop.permute.xlu0 %539
          %542 = vst.msk [vmem:[#allocation3] sm:$0xff] %vm449, %v540
        $region76: #{tpu_custom_call.1} parent=55 // pred_fallthru
          _
        %v543 = vld [vmem:[%s374] sm:$0xff]
        %v544 = vld [vmem:[%s2] sm:$0xff]
        %v545 = vld [vmem:[%s2 + $0x8] sm:$0xff]
        %v546 = vld [vmem:[%s2 + $0x10] sm:$0xff]
        %v547 = vld [vmem:[%s2 + $0x18] sm:$0xff]
        %v548 = vlaneseq
        %v549 = vshrl.u32 %v548, 7
        %v550 = vsub.s32 0, %v549
        %v551 = vrot.slane %v431, %v550
        %vm552 = vcmask 261120
        %v554 = vsel %vm552, %v543, 0
        %556 = vmatprep.subr.mxu0 0.0
        %557 = vmatpush1.msra.mxu0 0.0
        %558 = vmatprep.subr.mxu0 0.0
        %559 = vmatpush1.msra.mxu0 0.0
        %560 = vmatprep.subr.mxu0 0.0
        %561 = vmatpush1.msra.mxu0 0.0
        %562 = vmatprep.subr.mxu0 0.0
        %563 = vmatpush1.msra.mxu0 0.0
        %564 = vmatprep.subr.mxu0 0.0
        %565 = vmatpush1.msra.mxu0 0.0
        %566 = vmatprep.subr.mxu0 0.0
        %567 = vmatpush1.msra.mxu0 0.0
        %568 = vmatprep.subr.mxu0 0.0
        %569 = vmatpush1.msra.mxu0 0.0
        %570 = vmatprep.subr.mxu0 0.0
        %571 = vmatpush1.msra.mxu0 0.0
        %572 = vmatprep.subr.mxu0 0.0
        %573 = vmatpush1.msra.mxu0 0.0
        %574 = vmatprep.subr.mxu0 0.0
        %575 = vmatpush1.msra.mxu0 0.0
        %576 = vmatprep.subr.mxu0 0.0
        %577 = vmatpush1.msra.mxu0 0.0
        %578 = vmatprep.subr.mxu0 0.0
        %579 = vmatpush1.msra.mxu0 0.0
        %580 = vmatprep.subr.mxu0 0.0
        %581 = vmatpush1.msra.mxu0 %v547
        %582 = vmatprep.subr.mxu0 0.0
        %583 = vmatpush1.msra.mxu0 %v546
        %584 = vmatprep.subr.mxu0 0.0
        %585 = vmatpush1.msra.mxu0 %v545
        %586 = vmatprep.subr.mxu0 0.0
        %587 = vmatpush1.msra.mxu0 %v544
        %588 = vmatprep.subr.mxu0 0.0
        %589 = vmatpush2.msra.mxu0 0.0
        %590 = vmatprep.subr.mxu0 0.0
        %591 = vmatpush2.msra.mxu0 0.0
        %592 = vmatprep.subr.mxu0 0.0
        %593 = vmatpush2.msra.mxu0 0.0
        %594 = vmatprep.subr.mxu0 0.0
        %595 = vmatpush2.msra.mxu0 0.0
        %596 = vmatprep.subr.mxu0 0.0
        %597 = vmatpush2.msra.mxu0 0.0
        %598 = vmatprep.subr.mxu0 0.0
        %599 = vmatpush2.msra.mxu0 0.0
        %600 = vmatprep.subr.mxu0 0.0
        %601 = vmatpush2.msra.mxu0 0.0
        %602 = vmatprep.subr.mxu0 0.0
        %603 = vmatpush2.msra.mxu0 0.0
        %604 = vmatprep.subr.mxu0 0.0
        %605 = vmatpush2.msra.mxu0 0.0
        %606 = vmatprep.subr.mxu0 0.0
        %607 = vmatpush2.msra.mxu0 0.0
        %608 = vmatprep.subr.mxu0 0.0
        %609 = vmatpush2.msra.mxu0 0.0
        %610 = vmatprep.subr.mxu0 0.0
        %611 = vmatpush2.msra.mxu0 0.0
        %612 = vmatprep.subr.mxu0 0.0
        %613 = vmatpush2.msra.mxu0 0.0
        %614 = vmatprep.subr.mxu0 0.0
        %615 = vmatpush2.msra.mxu0 0.0
        %616 = vmatprep.subr.mxu0 0.0
        %617 = vmatpush2.msra.mxu0 0.0
        %618 = vmatprep.subr.mxu0 0.0
        %619 = vmatpush2.msra.mxu0 0.0
        %620 = vmatprep.mubr.f32.mxu0 0.0
        %621 = vmatmul.mubr.f32.gmra.mxu0 %v554
        %v622 = vpop.f32.mrf.mxu0
        %v623 = vadd.f32 %v551, %v622
        %v624 = vpop.f32.mrf.mxu0
        %625 = vdwg.mxu0
        %v626 = vmul.f32 %v623, 0.35355338
        %628 = vrot.lane.b32.xlu0 %v626, 120
        %v629 = vpop.permute.xlu0 %628
        %630 = vrot.lane.b32.xlu0 %v626, 112
        %v631 = vpop.permute.xlu0 %630
        %632 = vrot.lane.b32.xlu0 %v626, 104
        %v633 = vpop.permute.xlu0 %632
        %v634 = vld [vmem:[#allocation2] sm:$0xff]
        %636 = vrot.lane.b32.xlu0 %v634, 120
        %v637 = vpop.permute.xlu0 %636
        %639 = vrot.lane.b32.xlu0 %v634, 112
        %v640 = vpop.permute.xlu0 %639
        %642 = vrot.lane.b32.xlu0 %v634, 104
        %v643 = vpop.permute.xlu0 %642
        %v645 = vld [vmem:[#allocation3] sm:$0xff]
        %647 = vrot.lane.b32.xlu0 %v645, 120
        %v648 = vpop.permute.xlu0 %647
        %650 = vrot.lane.b32.xlu0 %v645, 112
        %v651 = vpop.permute.xlu0 %650
        %653 = vrot.lane.b32.xlu0 %v645, 104
        %v654 = vpop.permute.xlu0 %653
        %656 = vxpose.xlu0.b32.start [1/16] %v634, 128
        %657 = vxpose.xlu0.b32.cont [2/16] 0.0, 128
        %658 = vxpose.xlu0.b32.cont [3/16] 0.0, 128
        %659 = vxpose.xlu0.b32.cont [4/16] 0.0, 128
        %660 = vxpose.xlu0.b32.cont [5/16] 0.0, 128
        %661 = vxpose.xlu0.b32.cont [6/16] 0.0, 128
        %662 = vxpose.xlu0.b32.cont [7/16] 0.0, 128
        %663 = vxpose.xlu0.b32.cont [8/16] 0.0, 128
        %664 = vxpose.xlu0.b32.cont [9/16] 0.0, 128
        %665 = vxpose.xlu0.b32.cont [10/16] 0.0, 128
        %666 = vxpose.xlu0.b32.cont [11/16] 0.0, 128
        %667 = vxpose.xlu0.b32.cont [12/16] 0.0, 128
        %668 = vxpose.xlu0.b32.cont [13/16] 0.0, 128
        %669 = vxpose.xlu0.b32.cont [14/16] 0.0, 128
        %670 = vxpose.xlu0.b32.cont [15/16] 0.0, 128
        %671 = vxpose.xlu0.b32.end [16/16] 0.0, 128
        %v672 = vpop.trf.xlu0
        %v673 = vpop.trf.xlu0
        %v674 = vpop.trf.xlu0
        %v675 = vpop.trf.xlu0
        %v676 = vpop.trf.xlu0
        %v677 = vpop.trf.xlu0
        %v678 = vpop.trf.xlu0
        %v679 = vpop.trf.xlu0
        %v680 = vpop.trf.xlu0
        %v681 = vpop.trf.xlu0
        %v682 = vpop.trf.xlu0
        %v683 = vpop.trf.xlu0
        %v684 = vpop.trf.xlu0
        %v685 = vpop.trf.xlu0
        %v686 = vpop.trf.xlu0
        %v687 = vpop.trf.xlu0
        %688 = vxpose.xlu0.b32.start [1/16] %v637, 128
        %689 = vxpose.xlu0.b32.cont [2/16] 0.0, 128
        %690 = vxpose.xlu0.b32.cont [3/16] 0.0, 128
        %691 = vxpose.xlu0.b32.cont [4/16] 0.0, 128
        %692 = vxpose.xlu0.b32.cont [5/16] 0.0, 128
        %693 = vxpose.xlu0.b32.cont [6/16] 0.0, 128
        %694 = vxpose.xlu0.b32.cont [7/16] 0.0, 128
        %695 = vxpose.xlu0.b32.cont [8/16] 0.0, 128
        %696 = vxpose.xlu0.b32.cont [9/16] 0.0, 128
        %697 = vxpose.xlu0.b32.cont [10/16] 0.0, 128
        %698 = vxpose.xlu0.b32.cont [11/16] 0.0, 128
        %699 = vxpose.xlu0.b32.cont [12/16] 0.0, 128
        %700 = vxpose.xlu0.b32.cont [13/16] 0.0, 128
        %701 = vxpose.xlu0.b32.cont [14/16] 0.0, 128
        %702 = vxpose.xlu0.b32.cont [15/16] 0.0, 128
        %703 = vxpose.xlu0.b32.end [16/16] 0.0, 128
        %v704 = vpop.trf.xlu0
        %v705 = vpop.trf.xlu0
        %v706 = vpop.trf.xlu0
        %v707 = vpop.trf.xlu0
        %v708 = vpop.trf.xlu0
        %v709 = vpop.trf.xlu0
        %v710 = vpop.trf.xlu0
        %v711 = vpop.trf.xlu0
        %v712 = vpop.trf.xlu0
        %v713 = vpop.trf.xlu0
        %v714 = vpop.trf.xlu0
        %v715 = vpop.trf.xlu0
        %v716 = vpop.trf.xlu0
        %v717 = vpop.trf.xlu0
        %v718 = vpop.trf.xlu0
        %v719 = vpop.trf.xlu0
        %720 = vxpose.xlu0.b32.start [1/16] %v640, 128
        %721 = vxpose.xlu0.b32.cont [2/16] 0.0, 128
        %722 = vxpose.xlu0.b32.cont [3/16] 0.0, 128
        %723 = vxpose.xlu0.b32.cont [4/16] 0.0, 128
        %724 = vxpose.xlu0.b32.cont [5/16] 0.0, 128
        %725 = vxpose.xlu0.b32.cont [6/16] 0.0, 128
        %726 = vxpose.xlu0.b32.cont [7/16] 0.0, 128
        %727 = vxpose.xlu0.b32.cont [8/16] 0.0, 128
        %728 = vxpose.xlu0.b32.cont [9/16] 0.0, 128
        %729 = vxpose.xlu0.b32.cont [10/16] 0.0, 128
        %730 = vxpose.xlu0.b32.cont [11/16] 0.0, 128
        %731 = vxpose.xlu0.b32.cont [12/16] 0.0, 128
        %732 = vxpose.xlu0.b32.cont [13/16] 0.0, 128
        %733 = vxpose.xlu0.b32.cont [14/16] 0.0, 128
        %734 = vxpose.xlu0.b32.cont [15/16] 0.0, 128
        %735 = vxpose.xlu0.b32.end [16/16] 0.0, 128
        %v736 = vpop.trf.xlu0
        %v737 = vpop.trf.xlu0
        %v738 = vpop.trf.xlu0
        %v739 = vpop.trf.xlu0
        %v740 = vpop.trf.xlu0
        %v741 = vpop.trf.xlu0
        %v742 = vpop.trf.xlu0
        %v743 = vpop.trf.xlu0
        %v744 = vpop.trf.xlu0
        %v745 = vpop.trf.xlu0
        %v746 = vpop.trf.xlu0
        %v747 = vpop.trf.xlu0
        %v748 = vpop.trf.xlu0
        %v749 = vpop.trf.xlu0
        %v750 = vpop.trf.xlu0
        %v751 = vpop.trf.xlu0
        %752 = vxpose.xlu0.b32.start [1/16] %v643, 128
        %753 = vxpose.xlu0.b32.cont [2/16] 0.0, 128
        %754 = vxpose.xlu0.b32.cont [3/16] 0.0, 128
        %755 = vxpose.xlu0.b32.cont [4/16] 0.0, 128
        %756 = vxpose.xlu0.b32.cont [5/16] 0.0, 128
        %757 = vxpose.xlu0.b32.cont [6/16] 0.0, 128
        %758 = vxpose.xlu0.b32.cont [7/16] 0.0, 128
        %759 = vxpose.xlu0.b32.cont [8/16] 0.0, 128
        %760 = vxpose.xlu0.b32.cont [9/16] 0.0, 128
        %761 = vxpose.xlu0.b32.cont [10/16] 0.0, 128
        %762 = vxpose.xlu0.b32.cont [11/16] 0.0, 128
        %763 = vxpose.xlu0.b32.cont [12/16] 0.0, 128
        %764 = vxpose.xlu0.b32.cont [13/16] 0.0, 128
        %765 = vxpose.xlu0.b32.cont [14/16] 0.0, 128
        %766 = vxpose.xlu0.b32.cont [15/16] 0.0, 128
        %767 = vxpose.xlu0.b32.end [16/16] 0.0, 128
        %v768 = vpop.trf.xlu0
        %v769 = vpop.trf.xlu0
        %v770 = vpop.trf.xlu0
        %v771 = vpop.trf.xlu0
        %v772 = vpop.trf.xlu0
        %v773 = vpop.trf.xlu0
        %v774 = vpop.trf.xlu0
        %v775 = vpop.trf.xlu0
        %v776 = vpop.trf.xlu0
        %v777 = vpop.trf.xlu0
        %v778 = vpop.trf.xlu0
        %v779 = vpop.trf.xlu0
        %v780 = vpop.trf.xlu0
        %v781 = vpop.trf.xlu0
        %v782 = vpop.trf.xlu0
        %v783 = vpop.trf.xlu0
        %vm784 = vcmask 64512
        %v785 = vsel %vm784, %v626, 0
        %787 = vmatprep.subr.mxu0 0.0
        %788 = vmatpush1.msra.mxu0 0.0
        %789 = vmatprep.subr.mxu0 0.0
        %790 = vmatpush1.msra.mxu0 0.0
        %791 = vmatprep.subr.mxu0 0.0
        %792 = vmatpush1.msra.mxu0 0.0
        %793 = vmatprep.subr.mxu0 0.0
        %794 = vmatpush1.msra.mxu0 0.0
        %795 = vmatprep.subr.mxu0 0.0
        %796 = vmatpush1.msra.mxu0 0.0
        %797 = vmatprep.subr.mxu0 0.0
        %798 = vmatpush1.msra.mxu0 0.0
        %799 = vmatprep.subr.mxu0 0.0
        %800 = vmatpush1.msra.mxu0 0.0
        %801 = vmatprep.subr.mxu0 0.0
        %802 = vmatpush1.msra.mxu0 0.0
        %803 = vmatprep.subr.mxu0 0.0
        %804 = vmatpush1.msra.mxu0 0.0
        %805 = vmatprep.subr.mxu0 0.0
        %806 = vmatpush1.msra.mxu0 0.0
        %807 = vmatprep.subr.mxu0 0.0
        %808 = vmatpush1.msra.mxu0 0.0
        %809 = vmatprep.subr.mxu0 0.0
        %810 = vmatpush1.msra.mxu0 0.0
        %811 = vmatprep.subr.mxu0 0.0
        %812 = vmatpush1.msra.mxu0 0.0
        %813 = vmatprep.subr.mxu0 0.0
        %814 = vmatpush1.msra.mxu0 0.0
        %815 = vmatprep.subr.mxu0 0.0
        %816 = vmatpush1.msra.mxu0 0.0
        %817 = vmatprep.subr.mxu0 0.0
        %818 = vmatpush1.msra.mxu0 %v672
        %819 = vmatprep.subr.mxu0 0.0
        %820 = vmatpush2.msra.mxu0 0.0
        %821 = vmatprep.subr.mxu0 0.0
        %822 = vmatpush2.msra.mxu0 0.0
        %823 = vmatprep.subr.mxu0 0.0
        %824 = vmatpush2.msra.mxu0 0.0
        %825 = vmatprep.subr.mxu0 0.0
        %826 = vmatpush2.msra.mxu0 0.0
        %827 = vmatprep.subr.mxu0 0.0
        %828 = vmatpush2.msra.mxu0 0.0
        %829 = vmatprep.subr.mxu0 0.0
        %830 = vmatpush2.msra.mxu0 0.0
        %831 = vmatprep.subr.mxu0 0.0
        %832 = vmatpush2.msra.mxu0 0.0
        %833 = vmatprep.subr.mxu0 0.0
        %834 = vmatpush2.msra.mxu0 0.0
        %835 = vmatprep.subr.mxu0 0.0
        %836 = vmatpush2.msra.mxu0 0.0
        %837 = vmatprep.subr.mxu0 0.0
        %838 = vmatpush2.msra.mxu0 0.0
        %839 = vmatprep.subr.mxu0 0.0
        %840 = vmatpush2.msra.mxu0 0.0
        %841 = vmatprep.subr.mxu0 0.0
        %842 = vmatpush2.msra.mxu0 0.0
        %843 = vmatprep.subr.mxu0 0.0
        %844 = vmatpush2.msra.mxu0 0.0
        %845 = vmatprep.subr.mxu0 0.0
        %846 = vmatpush2.msra.mxu0 0.0
        %847 = vmatprep.subr.mxu0 0.0
        %848 = vmatpush2.msra.mxu0 0.0
        %849 = vmatprep.subr.mxu0 0.0
        %850 = vmatpush2.msra.mxu0 0.0
        %851 = vmatprep.mubr.f32.mxu0 0.0
        %852 = vmatmul.mubr.f32.gmra.mxu0 %v785
        %v853 = vpop.f32.mrf.mxu0
        %v854 = vadd.f32 0.0, %v853
        %v855 = vpop.f32.mrf.mxu0
        %856 = vdwg.mxu0
        %v857 = vsel %vm784, %v629, 0
        %859 = vmatprep.subr.mxu0 0.0
        %860 = vmatpush1.msra.mxu0 0.0
        %861 = vmatprep.subr.mxu0 0.0
        %862 = vmatpush1.msra.mxu0 0.0
        %863 = vmatprep.subr.mxu0 0.0
        %864 = vmatpush1.msra.mxu0 0.0
        %865 = vmatprep.subr.mxu0 0.0
        %866 = vmatpush1.msra.mxu0 0.0
        %867 = vmatprep.subr.mxu0 0.0
        %868 = vmatpush1.msra.mxu0 0.0
        %869 = vmatprep.subr.mxu0 0.0
        %870 = vmatpush1.msra.mxu0 0.0
        %871 = vmatprep.subr.mxu0 0.0
        %872 = vmatpush1.msra.mxu0 0.0
        %873 = vmatprep.subr.mxu0 0.0
        %874 = vmatpush1.msra.mxu0 0.0
        %875 = vmatprep.subr.mxu0 0.0
        %876 = vmatpush1.msra.mxu0 0.0
        %877 = vmatprep.subr.mxu0 0.0
        %878 = vmatpush1.msra.mxu0 0.0
        %879 = vmatprep.subr.mxu0 0.0
        %880 = vmatpush1.msra.mxu0 0.0
        %881 = vmatprep.subr.mxu0 0.0
        %882 = vmatpush1.msra.mxu0 0.0
        %883 = vmatprep.subr.mxu0 0.0
        %884 = vmatpush1.msra.mxu0 0.0
        %885 = vmatprep.subr.mxu0 0.0
        %886 = vmatpush1.msra.mxu0 0.0
        %887 = vmatprep.subr.mxu0 0.0
        %888 = vmatpush1.msra.mxu0 0.0
        %889 = vmatprep.subr.mxu0 0.0
        %890 = vmatpush1.msra.mxu0 %v704
        %891 = vmatprep.subr.mxu0 0.0
        %892 = vmatpush2.msra.mxu0 0.0
        %893 = vmatprep.subr.mxu0 0.0
        %894 = vmatpush2.msra.mxu0 0.0
        %895 = vmatprep.subr.mxu0 0.0
        %896 = vmatpush2.msra.mxu0 0.0
        %897 = vmatprep.subr.mxu0 0.0
        %898 = vmatpush2.msra.mxu0 0.0
        %899 = vmatprep.subr.mxu0 0.0
        %900 = vmatpush2.msra.mxu0 0.0
        %901 = vmatprep.subr.mxu0 0.0
        %902 = vmatpush2.msra.mxu0 0.0
        %903 = vmatprep.subr.mxu0 0.0
        %904 = vmatpush2.msra.mxu0 0.0
        %905 = vmatprep.subr.mxu0 0.0
        %906 = vmatpush2.msra.mxu0 0.0
        %907 = vmatprep.subr.mxu0 0.0
        %908 = vmatpush2.msra.mxu0 0.0
        %909 = vmatprep.subr.mxu0 0.0
        %910 = vmatpush2.msra.mxu0 0.0
        %911 = vmatprep.subr.mxu0 0.0
        %912 = vmatpush2.msra.mxu0 0.0
        %913 = vmatprep.subr.mxu0 0.0
        %914 = vmatpush2.msra.mxu0 0.0
        %915 = vmatprep.subr.mxu0 0.0
        %916 = vmatpush2.msra.mxu0 0.0
        %917 = vmatprep.subr.mxu0 0.0
        %918 = vmatpush2.msra.mxu0 0.0
        %919 = vmatprep.subr.mxu0 0.0
        %920 = vmatpush2.msra.mxu0 0.0
        %921 = vmatprep.subr.mxu0 0.0
        %922 = vmatpush2.msra.mxu0 0.0
        %923 = vmatprep.mubr.f32.mxu0 0.0
        %924 = vmatmul.mubr.f32.gmra.mxu0 %v857
        %v925 = vpop.f32.mrf.mxu0
        %v926 = vadd.f32 0.0, %v925
        %v927 = vpop.f32.mrf.mxu0
        %928 = vdwg.mxu0
        %v929 = vsel %vm784, %v631, 0
        %931 = vmatprep.subr.mxu0 0.0
        %932 = vmatpush1.msra.mxu0 0.0
        %933 = vmatprep.subr.mxu0 0.0
        %934 = vmatpush1.msra.mxu0 0.0
        %935 = vmatprep.subr.mxu0 0.0
        %936 = vmatpush1.msra.mxu0 0.0
        %937 = vmatprep.subr.mxu0 0.0
        %938 = vmatpush1.msra.mxu0 0.0
        %939 = vmatprep.subr.mxu0 0.0
        %940 = vmatpush1.msra.mxu0 0.0
        %941 = vmatprep.subr.mxu0 0.0
        %942 = vmatpush1.msra.mxu0 0.0
        %943 = vmatprep.subr.mxu0 0.0
        %944 = vmatpush1.msra.mxu0 0.0
        %945 = vmatprep.subr.mxu0 0.0
        %946 = vmatpush1.msra.mxu0 0.0
        %947 = vmatprep.subr.mxu0 0.0
        %948 = vmatpush1.msra.mxu0 0.0
        %949 = vmatprep.subr.mxu0 0.0
        %950 = vmatpush1.msra.mxu0 0.0
        %951 = vmatprep.subr.mxu0 0.0
        %952 = vmatpush1.msra.mxu0 0.0
        %953 = vmatprep.subr.mxu0 0.0
        %954 = vmatpush1.msra.mxu0 0.0
        %955 = vmatprep.subr.mxu0 0.0
        %956 = vmatpush1.msra.mxu0 0.0
        %957 = vmatprep.subr.mxu0 0.0
        %958 = vmatpush1.msra.mxu0 0.0
        %959 = vmatprep.subr.mxu0 0.0
        %960 = vmatpush1.msra.mxu0 0.0
        %961 = vmatprep.subr.mxu0 0.0
        %962 = vmatpush1.msra.mxu0 %v736
        %963 = vmatprep.subr.mxu0 0.0
        %964 = vmatpush2.msra.mxu0 0.0
        %965 = vmatprep.subr.mxu0 0.0
        %966 = vmatpush2.msra.mxu0 0.0
        %967 = vmatprep.subr.mxu0 0.0
        %968 = vmatpush2.msra.mxu0 0.0
        %969 = vmatprep.subr.mxu0 0.0
        %970 = vmatpush2.msra.mxu0 0.0
        %971 = vmatprep.subr.mxu0 0.0
        %972 = vmatpush2.msra.mxu0 0.0
        %973 = vmatprep.subr.mxu0 0.0
        %974 = vmatpush2.msra.mxu0 0.0
        %975 = vmatprep.subr.mxu0 0.0
        %976 = vmatpush2.msra.mxu0 0.0
        %977 = vmatprep.subr.mxu0 0.0
        %978 = vmatpush2.msra.mxu0 0.0
        %979 = vmatprep.subr.mxu0 0.0
        %980 = vmatpush2.msra.mxu0 0.0
        %981 = vmatprep.subr.mxu0 0.0
        %982 = vmatpush2.msra.mxu0 0.0
        %983 = vmatprep.subr.mxu0 0.0
        %984 = vmatpush2.msra.mxu0 0.0
        %985 = vmatprep.subr.mxu0 0.0
        %986 = vmatpush2.msra.mxu0 0.0
        %987 = vmatprep.subr.mxu0 0.0
        %988 = vmatpush2.msra.mxu0 0.0
        %989 = vmatprep.subr.mxu0 0.0
        %990 = vmatpush2.msra.mxu0 0.0
        %991 = vmatprep.subr.mxu0 0.0
        %992 = vmatpush2.msra.mxu0 0.0
        %993 = vmatprep.subr.mxu0 0.0
        %994 = vmatpush2.msra.mxu0 0.0
        %995 = vmatprep.mubr.f32.mxu0 0.0
        %996 = vmatmul.mubr.f32.gmra.mxu0 %v929
        %v997 = vpop.f32.mrf.mxu0
        %v998 = vadd.f32 0.0, %v997
        %v999 = vpop.f32.mrf.mxu0
        %1000 = vdwg.mxu0
        %v1001 = vsel %vm784, %v633, 0
        %1003 = vmatprep.subr.mxu0 0.0
        %1004 = vmatpush1.msra.mxu0 0.0
        %1005 = vmatprep.subr.mxu0 0.0
        %1006 = vmatpush1.msra.mxu0 0.0
        %1007 = vmatprep.subr.mxu0 0.0
        %1008 = vmatpush1.msra.mxu0 0.0
        %1009 = vmatprep.subr.mxu0 0.0
        %1010 = vmatpush1.msra.mxu0 0.0
        %1011 = vmatprep.subr.mxu0 0.0
        %1012 = vmatpush1.msra.mxu0 0.0
        %1013 = vmatprep.subr.mxu0 0.0
        %1014 = vmatpush1.msra.mxu0 0.0
        %1015 = vmatprep.subr.mxu0 0.0
        %1016 = vmatpush1.msra.mxu0 0.0
        %1017 = vmatprep.subr.mxu0 0.0
        %1018 = vmatpush1.msra.mxu0 0.0
        %1019 = vmatprep.subr.mxu0 0.0
        %1020 = vmatpush1.msra.mxu0 0.0
        %1021 = vmatprep.subr.mxu0 0.0
        %1022 = vmatpush1.msra.mxu0 0.0
        %1023 = vmatprep.subr.mxu0 0.0
        %1024 = vmatpush1.msra.mxu0 0.0
        %1025 = vmatprep.subr.mxu0 0.0
        %1026 = vmatpush1.msra.mxu0 0.0
        %1027 = vmatprep.subr.mxu0 0.0
        %1028 = vmatpush1.msra.mxu0 0.0
        %1029 = vmatprep.subr.mxu0 0.0
        %1030 = vmatpush1.msra.mxu0 0.0
        %1031 = vmatprep.subr.mxu0 0.0
        %1032 = vmatpush1.msra.mxu0 0.0
        %1033 = vmatprep.subr.mxu0 0.0
        %1034 = vmatpush1.msra.mxu0 %v768
        %1035 = vmatprep.subr.mxu0 0.0
        %1036 = vmatpush2.msra.mxu0 0.0
        %1037 = vmatprep.subr.mxu0 0.0
        %1038 = vmatpush2.msra.mxu0 0.0
        %1039 = vmatprep.subr.mxu0 0.0
        %1040 = vmatpush2.msra.mxu0 0.0
        %1041 = vmatprep.subr.mxu0 0.0
        %1042 = vmatpush2.msra.mxu0 0.0
        %1043 = vmatprep.subr.mxu0 0.0
        %1044 = vmatpush2.msra.mxu0 0.0
        %1045 = vmatprep.subr.mxu0 0.0
        %1046 = vmatpush2.msra.mxu0 0.0
        %1047 = vmatprep.subr.mxu0 0.0
        %1048 = vmatpush2.msra.mxu0 0.0
        %1049 = vmatprep.subr.mxu0 0.0
        %1050 = vmatpush2.msra.mxu0 0.0
        %1051 = vmatprep.subr.mxu0 0.0
        %1052 = vmatpush2.msra.mxu0 0.0
        %1053 = vmatprep.subr.mxu0 0.0
        %1054 = vmatpush2.msra.mxu0 0.0
        %1055 = vmatprep.subr.mxu0 0.0
        %1056 = vmatpush2.msra.mxu0 0.0
        %1057 = vmatprep.subr.mxu0 0.0
        %1058 = vmatpush2.msra.mxu0 0.0
        %1059 = vmatprep.subr.mxu0 0.0
        %1060 = vmatpush2.msra.mxu0 0.0
        %1061 = vmatprep.subr.mxu0 0.0
        %1062 = vmatpush2.msra.mxu0 0.0
        %1063 = vmatprep.subr.mxu0 0.0
        %1064 = vmatpush2.msra.mxu0 0.0
        %1065 = vmatprep.subr.mxu0 0.0
        %1066 = vmatpush2.msra.mxu0 0.0
        %1067 = vmatprep.mubr.f32.mxu0 0.0
        %1068 = vmatmul.mubr.f32.gmra.mxu0 %v1001
        %v1069 = vpop.f32.mrf.mxu0
        %v1070 = vadd.f32 0.0, %v1069
        %v1071 = vpop.f32.mrf.mxu0
        %1072 = vdwg.mxu0
        %v1073 = vsel %vm784, %v854, -inf
        %1074 = vmax.xlane.f32.xlu0 %v1073
        %v1075 = vpop.xlane.xlu0 %1074
        %v1076 = vsel %vm784, %v926, -inf
        %1077 = vmax.xlane.f32.xlu0 %v1076
        %v1078 = vpop.xlane.xlu0 %1077
        %v1079 = vsel %vm784, %v998, -inf
        %1080 = vmax.xlane.f32.xlu0 %v1079
        %v1081 = vpop.xlane.xlu0 %1080
        %v1082 = vsel %vm784, %v1070, -inf
        %1083 = vmax.xlane.f32.xlu0 %v1082
        %v1084 = vpop.xlane.xlu0 %1083
        %v1085 = vsub.f32 %v854, %v1075
        %v1086 = vsub.f32 %v926, %v1078
        %v1087 = vsub.f32 %v998, %v1081
        %v1088 = vsub.f32 %v1070, %v1084
        %v1089 = vmul.f32 %v1085, 1.442695
        %v1090 = vpow.pop %v1089
        %v1091 = vmul.f32 %v1086, 1.442695
        %v1092 = vpow.pop %v1091
        %v1093 = vmul.f32 %v1087, 1.442695
        %v1094 = vpow.pop %v1093
        %v1095 = vmul.f32 %v1088, 1.442695
        %v1096 = vpow.pop %v1095
        %v1097 = vsel %vm784, %v1090, 0.0
        %1098 = vadd.xlane.f32.xlu0 %v1097
        %v1099 = vpop.xlane.xlu0 %1098
        %v1100 = vsel %vm784, %v1092, 0.0
        %1101 = vadd.xlane.f32.xlu0 %v1100
        %v1102 = vpop.xlane.xlu0 %1101
        %v1103 = vsel %vm784, %v1094, 0.0
        %1104 = vadd.xlane.f32.xlu0 %v1103
        %v1105 = vpop.xlane.xlu0 %1104
        %v1106 = vsel %vm784, %v1096, 0.0
        %1107 = vadd.xlane.f32.xlu0 %v1106
        %v1108 = vpop.xlane.xlu0 %1107
        %v1109 = vrcp.pop %v1099
        %v1110 = vrcp.pop %v1102
        %v1111 = vrcp.pop %v1105
        %v1112 = vrcp.pop %v1108
        %v1113 = vmul.f32 %v1090, %v1109
        %v1114 = vmul.f32 %v1092, %v1110
        %v1115 = vmul.f32 %v1094, %v1111
        %v1116 = vmul.f32 %v1096, %v1112
        %1117 = vxpose.xlu0.b32.start [1/16] %v645, 128
        %1118 = vxpose.xlu0.b32.cont [2/16] 0.0, 128
        %1119 = vxpose.xlu0.b32.cont [3/16] 0.0, 128
        %1120 = vxpose.xlu0.b32.cont [4/16] 0.0, 128
        %1121 = vxpose.xlu0.b32.cont [5/16] 0.0, 128
        %1122 = vxpose.xlu0.b32.cont [6/16] 0.0, 128
        %1123 = vxpose.xlu0.b32.cont [7/16] 0.0, 128
        %1124 = vxpose.xlu0.b32.cont [8/16] 0.0, 128
        %1125 = vxpose.xlu0.b32.cont [9/16] 0.0, 128
        %1126 = vxpose.xlu0.b32.cont [10/16] 0.0, 128
        %1127 = vxpose.xlu0.b32.cont [11/16] 0.0, 128
        %1128 = vxpose.xlu0.b32.cont [12/16] 0.0, 128
        %1129 = vxpose.xlu0.b32.cont [13/16] 0.0, 128
        %1130 = vxpose.xlu0.b32.cont [14/16] 0.0, 128
        %1131 = vxpose.xlu0.b32.cont [15/16] 0.0, 128
        %1132 = vxpose.xlu0.b32.end [16/16] 0.0, 128
        %v1133 = vpop.trf.xlu0
        %v1134 = vpop.trf.xlu0
        %v1135 = vpop.trf.xlu0
        %v1136 = vpop.trf.xlu0
        %v1137 = vpop.trf.xlu0
        %v1138 = vpop.trf.xlu0
        %v1139 = vpop.trf.xlu0
        %v1140 = vpop.trf.xlu0
        %v1141 = vpop.trf.xlu0
        %v1142 = vpop.trf.xlu0
        %v1143 = vpop.trf.xlu0
        %v1144 = vpop.trf.xlu0
        %v1145 = vpop.trf.xlu0
        %v1146 = vpop.trf.xlu0
        %v1147 = vpop.trf.xlu0
        %v1148 = vpop.trf.xlu0
        %1149 = vxpose.xlu0.b32.start [1/16] %v648, 128
        %1150 = vxpose.xlu0.b32.cont [2/16] 0.0, 128
        %1151 = vxpose.xlu0.b32.cont [3/16] 0.0, 128
        %1152 = vxpose.xlu0.b32.cont [4/16] 0.0, 128
        %1153 = vxpose.xlu0.b32.cont [5/16] 0.0, 128
        %1154 = vxpose.xlu0.b32.cont [6/16] 0.0, 128
        %1155 = vxpose.xlu0.b32.cont [7/16] 0.0, 128
        %1156 = vxpose.xlu0.b32.cont [8/16] 0.0, 128
        %1157 = vxpose.xlu0.b32.cont [9/16] 0.0, 128
        %1158 = vxpose.xlu0.b32.cont [10/16] 0.0, 128
        %1159 = vxpose.xlu0.b32.cont [11/16] 0.0, 128
        %1160 = vxpose.xlu0.b32.cont [12/16] 0.0, 128
        %1161 = vxpose.xlu0.b32.cont [13/16] 0.0, 128
        %1162 = vxpose.xlu0.b32.cont [14/16] 0.0, 128
        %1163 = vxpose.xlu0.b32.cont [15/16] 0.0, 128
        %1164 = vxpose.xlu0.b32.end [16/16] 0.0, 128
        %v1165 = vpop.trf.xlu0
        %v1166 = vpop.trf.xlu0
        %v1167 = vpop.trf.xlu0
        %v1168 = vpop.trf.xlu0
        %v1169 = vpop.trf.xlu0
        %v1170 = vpop.trf.xlu0
        %v1171 = vpop.trf.xlu0
        %v1172 = vpop.trf.xlu0
        %v1173 = vpop.trf.xlu0
        %v1174 = vpop.trf.xlu0
        %v1175 = vpop.trf.xlu0
        %v1176 = vpop.trf.xlu0
        %v1177 = vpop.trf.xlu0
        %v1178 = vpop.trf.xlu0
        %v1179 = vpop.trf.xlu0
        %v1180 = vpop.trf.xlu0
        %1181 = vxpose.xlu0.b32.start [1/16] %v651, 128
        %1182 = vxpose.xlu0.b32.cont [2/16] 0.0, 128
        %1183 = vxpose.xlu0.b32.cont [3/16] 0.0, 128
        %1184 = vxpose.xlu0.b32.cont [4/16] 0.0, 128
        %1185 = vxpose.xlu0.b32.cont [5/16] 0.0, 128
        %1186 = vxpose.xlu0.b32.cont [6/16] 0.0, 128
        %1187 = vxpose.xlu0.b32.cont [7/16] 0.0, 128
        %1188 = vxpose.xlu0.b32.cont [8/16] 0.0, 128
        %1189 = vxpose.xlu0.b32.cont [9/16] 0.0, 128
        %1190 = vxpose.xlu0.b32.cont [10/16] 0.0, 128
        %1191 = vxpose.xlu0.b32.cont [11/16] 0.0, 128
        %1192 = vxpose.xlu0.b32.cont [12/16] 0.0, 128
        %1193 = vxpose.xlu0.b32.cont [13/16] 0.0, 128
        %1194 = vxpose.xlu0.b32.cont [14/16] 0.0, 128
        %1195 = vxpose.xlu0.b32.cont [15/16] 0.0, 128
        %1196 = vxpose.xlu0.b32.end [16/16] 0.0, 128
        %v1197 = vpop.trf.xlu0
        %v1198 = vpop.trf.xlu0
        %v1199 = vpop.trf.xlu0
        %v1200 = vpop.trf.xlu0
        %v1201 = vpop.trf.xlu0
        %v1202 = vpop.trf.xlu0
        %v1203 = vpop.trf.xlu0
        %v1204 = vpop.trf.xlu0
        %v1205 = vpop.trf.xlu0
        %v1206 = vpop.trf.xlu0
        %v1207 = vpop.trf.xlu0
        %v1208 = vpop.trf.xlu0
        %v1209 = vpop.trf.xlu0
        %v1210 = vpop.trf.xlu0
        %v1211 = vpop.trf.xlu0
        %v1212 = vpop.trf.xlu0
        %1213 = vxpose.xlu0.b32.start [1/16] %v654, 128
        %1214 = vxpose.xlu0.b32.cont [2/16] 0.0, 128
        %1215 = vxpose.xlu0.b32.cont [3/16] 0.0, 128
        %1216 = vxpose.xlu0.b32.cont [4/16] 0.0, 128
        %1217 = vxpose.xlu0.b32.cont [5/16] 0.0, 128
        %1218 = vxpose.xlu0.b32.cont [6/16] 0.0, 128
        %1219 = vxpose.xlu0.b32.cont [7/16] 0.0, 128
        %1220 = vxpose.xlu0.b32.cont [8/16] 0.0, 128
        %1221 = vxpose.xlu0.b32.cont [9/16] 0.0, 128
        %1222 = vxpose.xlu0.b32.cont [10/16] 0.0, 128
        %1223 = vxpose.xlu0.b32.cont [11/16] 0.0, 128
        %1224 = vxpose.xlu0.b32.cont [12/16] 0.0, 128
        %1225 = vxpose.xlu0.b32.cont [13/16] 0.0, 128
        %1226 = vxpose.xlu0.b32.cont [14/16] 0.0, 128
        %1227 = vxpose.xlu0.b32.cont [15/16] 0.0, 128
        %1228 = vxpose.xlu0.b32.end [16/16] 0.0, 128
        %v1229 = vpop.trf.xlu0
        %v1230 = vpop.trf.xlu0
        %v1231 = vpop.trf.xlu0
        %v1232 = vpop.trf.xlu0
        %v1233 = vpop.trf.xlu0
        %v1234 = vpop.trf.xlu0
        %v1235 = vpop.trf.xlu0
        %v1236 = vpop.trf.xlu0
        %v1237 = vpop.trf.xlu0
        %v1238 = vpop.trf.xlu0
        %v1239 = vpop.trf.xlu0
        %v1240 = vpop.trf.xlu0
        %v1241 = vpop.trf.xlu0
        %v1242 = vpop.trf.xlu0
        %v1243 = vpop.trf.xlu0
        %v1244 = vpop.trf.xlu0
        %v1246 = vsel %vm784, %v1133, 0
        %v1249 = vsel %vm784, %v1113, 0
        %1251 = vmatprep.subr.mxu0 0.0
        %1252 = vmatpush1.xpose.msra.mxu0 0.0
        %1253 = vmatprep.subr.mxu0 0.0
        %1254 = vmatpush1.xpose.msra.mxu0 0.0
        %1255 = vmatprep.subr.mxu0 0.0
        %1256 = vmatpush1.xpose.msra.mxu0 0.0
        %1257 = vmatprep.subr.mxu0 0.0
        %1258 = vmatpush1.xpose.msra.mxu0 0.0
        %1259 = vmatprep.subr.mxu0 0.0
        %1260 = vmatpush1.xpose.msra.mxu0 0.0
        %1261 = vmatprep.subr.mxu0 0.0
        %1262 = vmatpush1.xpose.msra.mxu0 0.0
        %1263 = vmatprep.subr.mxu0 0.0
        %1264 = vmatpush1.xpose.msra.mxu0 0.0
        %1265 = vmatprep.subr.mxu0 0.0
        %1266 = vmatpush1.xpose.msra.mxu0 0.0
        %1267 = vmatprep.subr.mxu0 0.0
        %1268 = vmatpush1.xpose.msra.mxu0 0.0
        %1269 = vmatprep.subr.mxu0 0.0
        %1270 = vmatpush1.xpose.msra.mxu0 0.0
        %1271 = vmatprep.subr.mxu0 0.0
        %1272 = vmatpush1.xpose.msra.mxu0 0.0
        %1273 = vmatprep.subr.mxu0 0.0
        %1274 = vmatpush1.xpose.msra.mxu0 0.0
        %1275 = vmatprep.subr.mxu0 0.0
        %1276 = vmatpush1.xpose.msra.mxu0 0.0
        %1277 = vmatprep.subr.mxu0 0.0
        %1278 = vmatpush1.xpose.msra.mxu0 0.0
        %1279 = vmatprep.subr.mxu0 0.0
        %1280 = vmatpush1.xpose.msra.mxu0 0.0
        %1281 = vmatprep.subr.mxu0 0.0
        %1282 = vmatpush1.xpose.msra.mxu0 %v1249
        %1283 = vmatprep.subr.mxu0 0.0
        %1284 = vmatpush2.xpose.msra.mxu0 0.0
        %1285 = vmatprep.subr.mxu0 0.0
        %1286 = vmatpush2.xpose.msra.mxu0 0.0
        %1287 = vmatprep.subr.mxu0 0.0
        %1288 = vmatpush2.xpose.msra.mxu0 0.0
        %1289 = vmatprep.subr.mxu0 0.0
        %1290 = vmatpush2.xpose.msra.mxu0 0.0
        %1291 = vmatprep.subr.mxu0 0.0
        %1292 = vmatpush2.xpose.msra.mxu0 0.0
        %1293 = vmatprep.subr.mxu0 0.0
        %1294 = vmatpush2.xpose.msra.mxu0 0.0
        %1295 = vmatprep.subr.mxu0 0.0
        %1296 = vmatpush2.xpose.msra.mxu0 0.0
        %1297 = vmatprep.subr.mxu0 0.0
        %1298 = vmatpush2.xpose.msra.mxu0 0.0
        %1299 = vmatprep.subr.mxu0 0.0
        %1300 = vmatpush2.xpose.msra.mxu0 0.0
        %1301 = vmatprep.subr.mxu0 0.0
        %1302 = vmatpush2.xpose.msra.mxu0 0.0
        %1303 = vmatprep.subr.mxu0 0.0
        %1304 = vmatpush2.xpose.msra.mxu0 0.0
        %1305 = vmatprep.subr.mxu0 0.0
        %1306 = vmatpush2.xpose.msra.mxu0 0.0
        %1307 = vmatprep.subr.mxu0 0.0
        %1308 = vmatpush2.xpose.msra.mxu0 0.0
        %1309 = vmatprep.subr.mxu0 0.0
        %1310 = vmatpush2.xpose.msra.mxu0 0.0
        %1311 = vmatprep.subr.mxu0 0.0
        %1312 = vmatpush2.xpose.msra.mxu0 0.0
        %1313 = vmatprep.subr.mxu0 0.0
        %1314 = vmatpush2.xpose.msra.mxu0 0.0
        %1315 = vmatprep.mubr.f32.mxu0 0.0
        %1316 = vmatmul.mubr.f32.gmra.mxu0 %v1246
        %v1317 = vpop.f32.mrf.mxu0
        %v1318 = vadd.f32 0.0, %v1317
        %v1319 = vpop.f32.mrf.mxu0
        %1320 = vdwg.mxu0
        %v1322 = vsel %vm784, %v1165, 0
        %v1325 = vsel %vm784, %v1114, 0
        %1327 = vmatprep.subr.mxu0 0.0
        %1328 = vmatpush1.xpose.msra.mxu0 0.0
        %1329 = vmatprep.subr.mxu0 0.0
        %1330 = vmatpush1.xpose.msra.mxu0 0.0
        %1331 = vmatprep.subr.mxu0 0.0
        %1332 = vmatpush1.xpose.msra.mxu0 0.0
        %1333 = vmatprep.subr.mxu0 0.0
        %1334 = vmatpush1.xpose.msra.mxu0 0.0
        %1335 = vmatprep.subr.mxu0 0.0
        %1336 = vmatpush1.xpose.msra.mxu0 0.0
        %1337 = vmatprep.subr.mxu0 0.0
        %1338 = vmatpush1.xpose.msra.mxu0 0.0
        %1339 = vmatprep.subr.mxu0 0.0
        %1340 = vmatpush1.xpose.msra.mxu0 0.0
        %1341 = vmatprep.subr.mxu0 0.0
        %1342 = vmatpush1.xpose.msra.mxu0 0.0
        %1343 = vmatprep.subr.mxu0 0.0
        %1344 = vmatpush1.xpose.msra.mxu0 0.0
        %1345 = vmatprep.subr.mxu0 0.0
        %1346 = vmatpush1.xpose.msra.mxu0 0.0
        %1347 = vmatprep.subr.mxu0 0.0
        %1348 = vmatpush1.xpose.msra.mxu0 0.0
        %1349 = vmatprep.subr.mxu0 0.0
        %1350 = vmatpush1.xpose.msra.mxu0 0.0
        %1351 = vmatprep.subr.mxu0 0.0
        %1352 = vmatpush1.xpose.msra.mxu0 0.0
        %1353 = vmatprep.subr.mxu0 0.0
        %1354 = vmatpush1.xpose.msra.mxu0 0.0
        %1355 = vmatprep.subr.mxu0 0.0
        %1356 = vmatpush1.xpose.msra.mxu0 0.0
        %1357 = vmatprep.subr.mxu0 0.0
        %1358 = vmatpush1.xpose.msra.mxu0 %v1325
        %1359 = vmatprep.subr.mxu0 0.0
        %1360 = vmatpush2.xpose.msra.mxu0 0.0
        %1361 = vmatprep.subr.mxu0 0.0
        %1362 = vmatpush2.xpose.msra.mxu0 0.0
        %1363 = vmatprep.subr.mxu0 0.0
        %1364 = vmatpush2.xpose.msra.mxu0 0.0
        %1365 = vmatprep.subr.mxu0 0.0
        %1366 = vmatpush2.xpose.msra.mxu0 0.0
        %1367 = vmatprep.subr.mxu0 0.0
        %1368 = vmatpush2.xpose.msra.mxu0 0.0
        %1369 = vmatprep.subr.mxu0 0.0
        %1370 = vmatpush2.xpose.msra.mxu0 0.0
        %1371 = vmatprep.subr.mxu0 0.0
        %1372 = vmatpush2.xpose.msra.mxu0 0.0
        %1373 = vmatprep.subr.mxu0 0.0
        %1374 = vmatpush2.xpose.msra.mxu0 0.0
        %1375 = vmatprep.subr.mxu0 0.0
        %1376 = vmatpush2.xpose.msra.mxu0 0.0
        %1377 = vmatprep.subr.mxu0 0.0
        %1378 = vmatpush2.xpose.msra.mxu0 0.0
        %1379 = vmatprep.subr.mxu0 0.0
        %1380 = vmatpush2.xpose.msra.mxu0 0.0
        %1381 = vmatprep.subr.mxu0 0.0
        %1382 = vmatpush2.xpose.msra.mxu0 0.0
        %1383 = vmatprep.subr.mxu0 0.0
        %1384 = vmatpush2.xpose.msra.mxu0 0.0
        %1385 = vmatprep.subr.mxu0 0.0
        %1386 = vmatpush2.xpose.msra.mxu0 0.0
        %1387 = vmatprep.subr.mxu0 0.0
        %1388 = vmatpush2.xpose.msra.mxu0 0.0
        %1389 = vmatprep.subr.mxu0 0.0
        %1390 = vmatpush2.xpose.msra.mxu0 0.0
        %1391 = vmatprep.mubr.f32.mxu0 0.0
        %1392 = vmatmul.mubr.f32.gmra.mxu0 %v1322
        %v1393 = vpop.f32.mrf.mxu0
        %v1394 = vadd.f32 0.0, %v1393
        %v1395 = vpop.f32.mrf.mxu0
        %1396 = vdwg.mxu0
        %v1398 = vsel %vm784, %v1197, 0
        %v1401 = vsel %vm784, %v1115, 0
        %1403 = vmatprep.subr.mxu0 0.0
        %1404 = vmatpush1.xpose.msra.mxu0 0.0
        %1405 = vmatprep.subr.mxu0 0.0
        %1406 = vmatpush1.xpose.msra.mxu0 0.0
        %1407 = vmatprep.subr.mxu0 0.0
        %1408 = vmatpush1.xpose.msra.mxu0 0.0
        %1409 = vmatprep.subr.mxu0 0.0
        %1410 = vmatpush1.xpose.msra.mxu0 0.0
        %1411 = vmatprep.subr.mxu0 0.0
        %1412 = vmatpush1.xpose.msra.mxu0 0.0
        %1413 = vmatprep.subr.mxu0 0.0
        %1414 = vmatpush1.xpose.msra.mxu0 0.0
        %1415 = vmatprep.subr.mxu0 0.0
        %1416 = vmatpush1.xpose.msra.mxu0 0.0
        %1417 = vmatprep.subr.mxu0 0.0
        %1418 = vmatpush1.xpose.msra.mxu0 0.0
        %1419 = vmatprep.subr.mxu0 0.0
        %1420 = vmatpush1.xpose.msra.mxu0 0.0
        %1421 = vmatprep.subr.mxu0 0.0
        %1422 = vmatpush1.xpose.msra.mxu0 0.0
        %1423 = vmatprep.subr.mxu0 0.0
        %1424 = vmatpush1.xpose.msra.mxu0 0.0
        %1425 = vmatprep.subr.mxu0 0.0
        %1426 = vmatpush1.xpose.msra.mxu0 0.0
        %1427 = vmatprep.subr.mxu0 0.0
        %1428 = vmatpush1.xpose.msra.mxu0 0.0
        %1429 = vmatprep.subr.mxu0 0.0
        %1430 = vmatpush1.xpose.msra.mxu0 0.0
        %1431 = vmatprep.subr.mxu0 0.0
        %1432 = vmatpush1.xpose.msra.mxu0 0.0
        %1433 = vmatprep.subr.mxu0 0.0
        %1434 = vmatpush1.xpose.msra.mxu0 %v1401
        %1435 = vmatprep.subr.mxu0 0.0
        %1436 = vmatpush2.xpose.msra.mxu0 0.0
        %1437 = vmatprep.subr.mxu0 0.0
        %1438 = vmatpush2.xpose.msra.mxu0 0.0
        %1439 = vmatprep.subr.mxu0 0.0
        %1440 = vmatpush2.xpose.msra.mxu0 0.0
        %1441 = vmatprep.subr.mxu0 0.0
        %1442 = vmatpush2.xpose.msra.mxu0 0.0
        %1443 = vmatprep.subr.mxu0 0.0
        %1444 = vmatpush2.xpose.msra.mxu0 0.0
        %1445 = vmatprep.subr.mxu0 0.0
        %1446 = vmatpush2.xpose.msra.mxu0 0.0
        %1447 = vmatprep.subr.mxu0 0.0
        %1448 = vmatpush2.xpose.msra.mxu0 0.0
        %1449 = vmatprep.subr.mxu0 0.0
        %1450 = vmatpush2.xpose.msra.mxu0 0.0
        %1451 = vmatprep.subr.mxu0 0.0
        %1452 = vmatpush2.xpose.msra.mxu0 0.0
        %1453 = vmatprep.subr.mxu0 0.0
        %1454 = vmatpush2.xpose.msra.mxu0 0.0
        %1455 = vmatprep.subr.mxu0 0.0
        %1456 = vmatpush2.xpose.msra.mxu0 0.0
        %1457 = vmatprep.subr.mxu0 0.0
        %1458 = vmatpush2.xpose.msra.mxu0 0.0
        %1459 = vmatprep.subr.mxu0 0.0
        %1460 = vmatpush2.xpose.msra.mxu0 0.0
        %1461 = vmatprep.subr.mxu0 0.0
        %1462 = vmatpush2.xpose.msra.mxu0 0.0
        %1463 = vmatprep.subr.mxu0 0.0
        %1464 = vmatpush2.xpose.msra.mxu0 0.0
        %1465 = vmatprep.subr.mxu0 0.0
        %1466 = vmatpush2.xpose.msra.mxu0 0.0
        %1467 = vmatprep.mubr.f32.mxu0 0.0
        %1468 = vmatmul.mubr.f32.gmra.mxu0 %v1398
        %v1469 = vpop.f32.mrf.mxu0
        %v1470 = vadd.f32 0.0, %v1469
        %v1471 = vpop.f32.mrf.mxu0
        %1472 = vdwg.mxu0
        %v1474 = vsel %vm784, %v1229, 0
        %v1477 = vsel %vm784, %v1116, 0
        %1479 = vmatprep.subr.mxu0 0.0
        %1480 = vmatpush1.xpose.msra.mxu0 0.0
        %1481 = vmatprep.subr.mxu0 0.0
        %1482 = vmatpush1.xpose.msra.mxu0 0.0
        %1483 = vmatprep.subr.mxu0 0.0
        %1484 = vmatpush1.xpose.msra.mxu0 0.0
        %1485 = vmatprep.subr.mxu0 0.0
        %1486 = vmatpush1.xpose.msra.mxu0 0.0
        %1487 = vmatprep.subr.mxu0 0.0
        %1488 = vmatpush1.xpose.msra.mxu0 0.0
        %1489 = vmatprep.subr.mxu0 0.0
        %1490 = vmatpush1.xpose.msra.mxu0 0.0
        %1491 = vmatprep.subr.mxu0 0.0
        %1492 = vmatpush1.xpose.msra.mxu0 0.0
        %1493 = vmatprep.subr.mxu0 0.0
        %1494 = vmatpush1.xpose.msra.mxu0 0.0
        %1495 = vmatprep.subr.mxu0 0.0
        %1496 = vmatpush1.xpose.msra.mxu0 0.0
        %1497 = vmatprep.subr.mxu0 0.0
        %1498 = vmatpush1.xpose.msra.mxu0 0.0
        %1499 = vmatprep.subr.mxu0 0.0
        %1500 = vmatpush1.xpose.msra.mxu0 0.0
        %1501 = vmatprep.subr.mxu0 0.0
        %1502 = vmatpush1.xpose.msra.mxu0 0.0
        %1503 = vmatprep.subr.mxu0 0.0
        %1504 = vmatpush1.xpose.msra.mxu0 0.0
        %1505 = vmatprep.subr.mxu0 0.0
        %1506 = vmatpush1.xpose.msra.mxu0 0.0
        %1507 = vmatprep.subr.mxu0 0.0
        %1508 = vmatpush1.xpose.msra.mxu0 0.0
        %1509 = vmatprep.subr.mxu0 0.0
        %1510 = vmatpush1.xpose.msra.mxu0 %v1477
        %1511 = vmatprep.subr.mxu0 0.0
        %1512 = vmatpush2.xpose.msra.mxu0 0.0
        %1513 = vmatprep.subr.mxu0 0.0
        %1514 = vmatpush2.xpose.msra.mxu0 0.0
        %1515 = vmatprep.subr.mxu0 0.0
        %1516 = vmatpush2.xpose.msra.mxu0 0.0
        %1517 = vmatprep.subr.mxu0 0.0
        %1518 = vmatpush2.xpose.msra.mxu0 0.0
        %1519 = vmatprep.subr.mxu0 0.0
        %1520 = vmatpush2.xpose.msra.mxu0 0.0
        %1521 = vmatprep.subr.mxu0 0.0
        %1522 = vmatpush2.xpose.msra.mxu0 0.0
        %1523 = vmatprep.subr.mxu0 0.0
        %1524 = vmatpush2.xpose.msra.mxu0 0.0
        %1525 = vmatprep.subr.mxu0 0.0
        %1526 = vmatpush2.xpose.msra.mxu0 0.0
        %1527 = vmatprep.subr.mxu0 0.0
        %1528 = vmatpush2.xpose.msra.mxu0 0.0
        %1529 = vmatprep.subr.mxu0 0.0
        %1530 = vmatpush2.xpose.msra.mxu0 0.0
        %1531 = vmatprep.subr.mxu0 0.0
        %1532 = vmatpush2.xpose.msra.mxu0 0.0
        %1533 = vmatprep.subr.mxu0 0.0
        %1534 = vmatpush2.xpose.msra.mxu0 0.0
        %1535 = vmatprep.subr.mxu0 0.0
        %1536 = vmatpush2.xpose.msra.mxu0 0.0
        %1537 = vmatprep.subr.mxu0 0.0
        %1538 = vmatpush2.xpose.msra.mxu0 0.0
        %1539 = vmatprep.subr.mxu0 0.0
        %1540 = vmatpush2.xpose.msra.mxu0 0.0
        %1541 = vmatprep.subr.mxu0 0.0
        %1542 = vmatpush2.xpose.msra.mxu0 0.0
        %1543 = vmatprep.mubr.f32.mxu0 0.0
        %1544 = vmatmul.mubr.f32.gmra.mxu0 %v1474
        %v1545 = vpop.f32.mrf.mxu0
        %v1546 = vadd.f32 0.0, %v1545
        %v1547 = vpop.f32.mrf.mxu0
        %1548 = vdwg.mxu0
        %1549 = vxpose.xlu0.b32.start [1/16] %v1318, 128
        %1550 = vxpose.xlu0.b32.cont [2/16] 0.0, 128
        %1551 = vxpose.xlu0.b32.cont [3/16] 0.0, 128
        %1552 = vxpose.xlu0.b32.cont [4/16] 0.0, 128
        %1553 = vxpose.xlu0.b32.cont [5/16] 0.0, 128
        %1554 = vxpose.xlu0.b32.cont [6/16] 0.0, 128
        %1555 = vxpose.xlu0.b32.cont [7/16] 0.0, 128
        %1556 = vxpose.xlu0.b32.cont [8/16] 0.0, 128
        %1557 = vxpose.xlu0.b32.cont [9/16] 0.0, 128
        %1558 = vxpose.xlu0.b32.cont [10/16] 0.0, 128
        %1559 = vxpose.xlu0.b32.cont [11/16] 0.0, 128
        %1560 = vxpose.xlu0.b32.cont [12/16] 0.0, 128
        %1561 = vxpose.xlu0.b32.cont [13/16] 0.0, 128
        %1562 = vxpose.xlu0.b32.cont [14/16] 0.0, 128
        %1563 = vxpose.xlu0.b32.cont [15/16] 0.0, 128
        %1564 = vxpose.xlu0.b32.end [16/16] 0.0, 128
        %v1565 = vpop.trf.xlu0
        %v1566 = vpop.trf.xlu0
        %v1567 = vpop.trf.xlu0
        %v1568 = vpop.trf.xlu0
        %v1569 = vpop.trf.xlu0
        %v1570 = vpop.trf.xlu0
        %v1571 = vpop.trf.xlu0
        %v1572 = vpop.trf.xlu0
        %v1573 = vpop.trf.xlu0
        %v1574 = vpop.trf.xlu0
        %v1575 = vpop.trf.xlu0
        %v1576 = vpop.trf.xlu0
        %v1577 = vpop.trf.xlu0
        %v1578 = vpop.trf.xlu0
        %v1579 = vpop.trf.xlu0
        %v1580 = vpop.trf.xlu0
        %1581 = vxpose.xlu0.b32.start [1/16] %v1394, 128
        %1582 = vxpose.xlu0.b32.cont [2/16] 0.0, 128
        %1583 = vxpose.xlu0.b32.cont [3/16] 0.0, 128
        %1584 = vxpose.xlu0.b32.cont [4/16] 0.0, 128
        %1585 = vxpose.xlu0.b32.cont [5/16] 0.0, 128
        %1586 = vxpose.xlu0.b32.cont [6/16] 0.0, 128
        %1587 = vxpose.xlu0.b32.cont [7/16] 0.0, 128
        %1588 = vxpose.xlu0.b32.cont [8/16] 0.0, 128
        %1589 = vxpose.xlu0.b32.cont [9/16] 0.0, 128
        %1590 = vxpose.xlu0.b32.cont [10/16] 0.0, 128
        %1591 = vxpose.xlu0.b32.cont [11/16] 0.0, 128
        %1592 = vxpose.xlu0.b32.cont [12/16] 0.0, 128
        %1593 = vxpose.xlu0.b32.cont [13/16] 0.0, 128
        %1594 = vxpose.xlu0.b32.cont [14/16] 0.0, 128
        %1595 = vxpose.xlu0.b32.cont [15/16] 0.0, 128
        %1596 = vxpose.xlu0.b32.end [16/16] 0.0, 128
        %v1597 = vpop.trf.xlu0
        %v1598 = vpop.trf.xlu0
        %v1599 = vpop.trf.xlu0
        %v1600 = vpop.trf.xlu0
        %v1601 = vpop.trf.xlu0
        %v1602 = vpop.trf.xlu0
        %v1603 = vpop.trf.xlu0
        %v1604 = vpop.trf.xlu0
        %v1605 = vpop.trf.xlu0
        %v1606 = vpop.trf.xlu0
        %v1607 = vpop.trf.xlu0
        %v1608 = vpop.trf.xlu0
        %v1609 = vpop.trf.xlu0
        %v1610 = vpop.trf.xlu0
        %v1611 = vpop.trf.xlu0
        %v1612 = vpop.trf.xlu0
        %1613 = vxpose.xlu0.b32.start [1/16] %v1470, 128
        %1614 = vxpose.xlu0.b32.cont [2/16] 0.0, 128
        %1615 = vxpose.xlu0.b32.cont [3/16] 0.0, 128
        %1616 = vxpose.xlu0.b32.cont [4/16] 0.0, 128
        %1617 = vxpose.xlu0.b32.cont [5/16] 0.0, 128
        %1618 = vxpose.xlu0.b32.cont [6/16] 0.0, 128
        %1619 = vxpose.xlu0.b32.cont [7/16] 0.0, 128
        %1620 = vxpose.xlu0.b32.cont [8/16] 0.0, 128
        %1621 = vxpose.xlu0.b32.cont [9/16] 0.0, 128
        %1622 = vxpose.xlu0.b32.cont [10/16] 0.0, 128
        %1623 = vxpose.xlu0.b32.cont [11/16] 0.0, 128
        %1624 = vxpose.xlu0.b32.cont [12/16] 0.0, 128
        %1625 = vxpose.xlu0.b32.cont [13/16] 0.0, 128
        %1626 = vxpose.xlu0.b32.cont [14/16] 0.0, 128
        %1627 = vxpose.xlu0.b32.cont [15/16] 0.0, 128
        %1628 = vxpose.xlu0.b32.end [16/16] 0.0, 128
        %v1629 = vpop.trf.xlu0
        %v1630 = vpop.trf.xlu0
        %v1631 = vpop.trf.xlu0
        %v1632 = vpop.trf.xlu0
        %v1633 = vpop.trf.xlu0
        %v1634 = vpop.trf.xlu0
        %v1635 = vpop.trf.xlu0
        %v1636 = vpop.trf.xlu0
        %v1637 = vpop.trf.xlu0
        %v1638 = vpop.trf.xlu0
        %v1639 = vpop.trf.xlu0
        %v1640 = vpop.trf.xlu0
        %v1641 = vpop.trf.xlu0
        %v1642 = vpop.trf.xlu0
        %v1643 = vpop.trf.xlu0
        %v1644 = vpop.trf.xlu0
        %1645 = vxpose.xlu0.b32.start [1/16] %v1546, 128
        %1646 = vxpose.xlu0.b32.cont [2/16] 0.0, 128
        %1647 = vxpose.xlu0.b32.cont [3/16] 0.0, 128
        %1648 = vxpose.xlu0.b32.cont [4/16] 0.0, 128
        %1649 = vxpose.xlu0.b32.cont [5/16] 0.0, 128
        %1650 = vxpose.xlu0.b32.cont [6/16] 0.0, 128
        %1651 = vxpose.xlu0.b32.cont [7/16] 0.0, 128
        %1652 = vxpose.xlu0.b32.cont [8/16] 0.0, 128
        %1653 = vxpose.xlu0.b32.cont [9/16] 0.0, 128
        %1654 = vxpose.xlu0.b32.cont [10/16] 0.0, 128
        %1655 = vxpose.xlu0.b32.cont [11/16] 0.0, 128
        %1656 = vxpose.xlu0.b32.cont [12/16] 0.0, 128
        %1657 = vxpose.xlu0.b32.cont [13/16] 0.0, 128
        %1658 = vxpose.xlu0.b32.cont [14/16] 0.0, 128
        %1659 = vxpose.xlu0.b32.cont [15/16] 0.0, 128
        %1660 = vxpose.xlu0.b32.end [16/16] 0.0, 128
        %v1661 = vpop.trf.xlu0
        %v1662 = vpop.trf.xlu0
        %v1663 = vpop.trf.xlu0
        %v1664 = vpop.trf.xlu0
        %v1665 = vpop.trf.xlu0
        %v1666 = vpop.trf.xlu0
        %v1667 = vpop.trf.xlu0
        %v1668 = vpop.trf.xlu0
        %v1669 = vpop.trf.xlu0
        %v1670 = vpop.trf.xlu0
        %v1671 = vpop.trf.xlu0
        %v1672 = vpop.trf.xlu0
        %v1673 = vpop.trf.xlu0
        %v1674 = vpop.trf.xlu0
        %v1675 = vpop.trf.xlu0
        %v1676 = vpop.trf.xlu0
        %v1677 = vcombine.low %v1565, %v1629
        %v1678 = vcombine.high %v1565, %v1629
        %v1680 = vunpack.c.l.s4 1983009808
        %v1681 = vunpack.c.0.s8 %v1680
        %v1682 = vlaneseq
        %v1683 = vshrl.u32 %v1682, 7
        %v1684 = vsub.s32 %v1681, %v1683
        %v1685 = vrot.slane %v1677, %v1684
        %v1687 = vunpack.c.l.s4 1983009808
        %v1688 = vunpack.c.0.s8 %v1687
        %v1689 = vlaneseq
        %v1690 = vshrl.u32 %v1689, 7
        %v1691 = vsub.s32 %v1688, %v1690
        %v1692 = vrot.slane %v1678, %v1691
        %v1693 = vcombine.low %v1597, %v1661
        %v1694 = vcombine.high %v1597, %v1661
        %v1696 = vunpack.c.l.s4 1983009808
        %v1697 = vunpack.c.0.s8 %v1696
        %v1698 = vlaneseq
        %v1699 = vshrl.u32 %v1698, 7
        %v1700 = vsub.s32 %v1697, %v1699
        %v1701 = vrot.slane %v1693, %v1700
        %v1703 = vunpack.c.l.s4 1983009808
        %v1704 = vunpack.c.0.s8 %v1703
        %v1705 = vlaneseq
        %v1706 = vshrl.u32 %v1705, 7
        %v1707 = vsub.s32 %v1704, %v1706
        %v1708 = vrot.slane %v1694, %v1707
        %v1709 = vcombine.low %v1685, %v1701
        %v1710 = vcombine.high %v1685, %v1701
        %v1712 = vunpack.c.l.s4 1934713408
        %v1713 = vunpack.c.0.s8 %v1712
        %v1714 = vlaneseq
        %v1715 = vshrl.u32 %v1714, 7
        %v1716 = vsub.s32 %v1713, %v1715
        %v1717 = vrot.slane %v1709, %v1716
        %v1719 = vunpack.c.l.s4 1934713408
        %v1720 = vunpack.c.0.s8 %v1719
        %v1721 = vlaneseq
        %v1722 = vshrl.u32 %v1721, 7
        %v1723 = vsub.s32 %v1720, %v1722
        %v1724 = vrot.slane %v1710, %v1723
        %v1725 = vcombine.low %v1692, %v1708
        %v1726 = vcombine.high %v1692, %v1708
        %v1728 = vunpack.c.l.s4 1934713408
        %v1729 = vunpack.c.0.s8 %v1728
        %v1730 = vlaneseq
        %v1731 = vshrl.u32 %v1730, 7
        %v1732 = vsub.s32 %v1729, %v1731
        %v1733 = vrot.slane %v1725, %v1732
        %v1735 = vunpack.c.l.s4 1934713408
        %v1736 = vunpack.c.0.s8 %v1735
        %v1737 = vlaneseq
        %v1738 = vshrl.u32 %v1737, 7
        %v1739 = vsub.s32 %v1736, %v1738
        %v1740 = vrot.slane %v1726, %v1739
        %v1741 = vcombine.high %v1717, 0.0
        %v1742 = vcombine.high %v1724, 0.0
        %v1743 = vcombine.high %v1733, 0.0
        %v1744 = vcombine.high %v1740, 0.0
        %v1745 = vcombine.low %v1717, %v1724
        %v1747 = vunpack.c.l.s4 1983009808
        %v1748 = vunpack.c.0.s8 %v1747
        %v1749 = vlaneseq
        %v1750 = vshrl.u32 %v1749, 7
        %v1751 = vsub.s32 %v1748, %v1750
        %v1752 = vrot.slane %v1745, %v1751
        %v1753 = vcombine.low %v1741, %v1742
        %v1755 = vunpack.c.l.s4 1983009808
        %v1756 = vunpack.c.0.s8 %v1755
        %v1757 = vlaneseq
        %v1758 = vshrl.u32 %v1757, 7
        %v1759 = vsub.s32 %v1756, %v1758
        %v1760 = vrot.slane %v1753, %v1759
        %v1761 = vcombine.low %v1733, %v1740
        %v1763 = vunpack.c.l.s4 1983009808
        %v1764 = vunpack.c.0.s8 %v1763
        %v1765 = vlaneseq
        %v1766 = vshrl.u32 %v1765, 7
        %v1767 = vsub.s32 %v1764, %v1766
        %v1768 = vrot.slane %v1761, %v1767
        %v1769 = vcombine.low %v1743, %v1744
        %v1771 = vunpack.c.l.s4 1983009808
        %v1772 = vunpack.c.0.s8 %v1771
        %v1773 = vlaneseq
        %v1774 = vshrl.u32 %v1773, 7
        %v1775 = vsub.s32 %v1772, %v1774
        %v1776 = vrot.slane %v1769, %v1775
        %v1777 = vcombine.low %v1752, %v1760
        %v1778 = vcombine.high %v1752, %v1760
        %v1780 = vunpack.c.l.s4 1934713408
        %v1781 = vunpack.c.0.s8 %v1780
        %v1782 = vlaneseq
        %v1783 = vshrl.u32 %v1782, 7
        %v1784 = vsub.s32 %v1781, %v1783
        %v1785 = vrot.slane %v1777, %v1784
        %v1787 = vunpack.c.l.s4 1934713408
        %v1788 = vunpack.c.0.s8 %v1787
        %v1789 = vlaneseq
        %v1790 = vshrl.u32 %v1789, 7
        %v1791 = vsub.s32 %v1788, %v1790
        %v1792 = vrot.slane %v1778, %v1791
        %v1793 = vcombine.low %v1768, %v1776
        %v1794 = vcombine.high %v1768, %v1776
        %v1796 = vunpack.c.l.s4 1934713408
        %v1797 = vunpack.c.0.s8 %v1796
        %v1798 = vlaneseq
        %v1799 = vshrl.u32 %v1798, 7
        %v1800 = vsub.s32 %v1797, %v1799
        %v1801 = vrot.slane %v1793, %v1800
        %v1803 = vunpack.c.l.s4 1934713408
        %v1804 = vunpack.c.0.s8 %v1803
        %v1805 = vlaneseq
        %v1806 = vshrl.u32 %v1805, 7
        %v1807 = vsub.s32 %v1804, %v1806
        %v1808 = vrot.slane %v1794, %v1807
        %v1809 = vcombine.low %v1785, %v1801
        %v1810 = vcombine.high %v1785, %v1801
        %v1811 = vcombine.low %v1792, %v1808
        %v1812 = vcombine.high %v1792, %v1808
        %1814 = vrot.lane.b32.xlu0 %v1810, 8
        %v1815 = vpop.permute.xlu0 %1814
        %1818 = vrot.lane.b32.xlu0 %v1811, 16
        %v1819 = vpop.permute.xlu0 %1818
        %1822 = vrot.lane.b32.xlu0 %v1812, 24
        %v1823 = vpop.permute.xlu0 %1822
        %v1825 = vsel %vm784, %v1809, %v1815
        %vm1826 = vcmask 130048
        %v1827 = vsel %vm1826, %v1825, %v1819
        %vm1828 = vcmask 195584
        %v1829 = vsel %vm1828, %v1827, %v1823
        %v1830 = vld [vmem:[%s4] sm:$0xff]
        %v1831 = vld [vmem:[%s4 + $0x8] sm:$0xff]
        %v1832 = vld [vmem:[%s4 + $0x10] sm:$0xff]
        %v1833 = vld [vmem:[%s4 + $0x18] sm:$0xff]
        %v1834 = vlaneseq
        %v1835 = vshrl.u32 %v1834, 7
        %v1836 = vsub.s32 0, %v1835
        %v1837 = vrot.slane %v434, %v1836
        %v1839 = vsel %vm552, %v1829, 0
        %1841 = vmatprep.subr.mxu0 0.0
        %1842 = vmatpush1.msra.mxu0 0.0
        %1843 = vmatprep.subr.mxu0 0.0
        %1844 = vmatpush1.msra.mxu0 0.0
        %1845 = vmatprep.subr.mxu0 0.0
        %1846 = vmatpush1.msra.mxu0 0.0
        %1847 = vmatprep.subr.mxu0 0.0
        %1848 = vmatpush1.msra.mxu0 0.0
        %1849 = vmatprep.subr.mxu0 0.0
        %1850 = vmatpush1.msra.mxu0 0.0
        %1851 = vmatprep.subr.mxu0 0.0
        %1852 = vmatpush1.msra.mxu0 0.0
        %1853 = vmatprep.subr.mxu0 0.0
        %1854 = vmatpush1.msra.mxu0 0.0
        %1855 = vmatprep.subr.mxu0 0.0
        %1856 = vmatpush1.msra.mxu0 0.0
        %1857 = vmatprep.subr.mxu0 0.0
        %1858 = vmatpush1.msra.mxu0 0.0
        %1859 = vmatprep.subr.mxu0 0.0
        %1860 = vmatpush1.msra.mxu0 0.0
        %1861 = vmatprep.subr.mxu0 0.0
        %1862 = vmatpush1.msra.mxu0 0.0
        %1863 = vmatprep.subr.mxu0 0.0
        %1864 = vmatpush1.msra.mxu0 0.0
        %1865 = vmatprep.subr.mxu0 0.0
        %1866 = vmatpush1.msra.mxu0 %v1833
        %1867 = vmatprep.subr.mxu0 0.0
        %1868 = vmatpush1.msra.mxu0 %v1832
        %1869 = vmatprep.subr.mxu0 0.0
        %1870 = vmatpush1.msra.mxu0 %v1831
        %1871 = vmatprep.subr.mxu0 0.0
        %1872 = vmatpush1.msra.mxu0 %v1830
        %1873 = vmatprep.subr.mxu0 0.0
        %1874 = vmatpush2.msra.mxu0 0.0
        %1875 = vmatprep.subr.mxu0 0.0
        %1876 = vmatpush2.msra.mxu0 0.0
        %1877 = vmatprep.subr.mxu0 0.0
        %1878 = vmatpush2.msra.mxu0 0.0
        %1879 = vmatprep.subr.mxu0 0.0
        %1880 = vmatpush2.msra.mxu0 0.0
        %1881 = vmatprep.subr.mxu0 0.0
        %1882 = vmatpush2.msra.mxu0 0.0
        %1883 = vmatprep.subr.mxu0 0.0
        %1884 = vmatpush2.msra.mxu0 0.0
        %1885 = vmatprep.subr.mxu0 0.0
        %1886 = vmatpush2.msra.mxu0 0.0
        %1887 = vmatprep.subr.mxu0 0.0
        %1888 = vmatpush2.msra.mxu0 0.0
        %1889 = vmatprep.subr.mxu0 0.0
        %1890 = vmatpush2.msra.mxu0 0.0
        %1891 = vmatprep.subr.mxu0 0.0
        %1892 = vmatpush2.msra.mxu0 0.0
        %1893 = vmatprep.subr.mxu0 0.0
        %1894 = vmatpush2.msra.mxu0 0.0
        %1895 = vmatprep.subr.mxu0 0.0
        %1896 = vmatpush2.msra.mxu0 0.0
        %1897 = vmatprep.subr.mxu0 0.0
        %1898 = vmatpush2.msra.mxu0 0.0
        %1899 = vmatprep.subr.mxu0 0.0
        %1900 = vmatpush2.msra.mxu0 0.0
        %1901 = vmatprep.subr.mxu0 0.0
        %1902 = vmatpush2.msra.mxu0 0.0
        %1903 = vmatprep.subr.mxu0 0.0
        %1904 = vmatpush2.msra.mxu0 0.0
        %1905 = vmatprep.mubr.f32.mxu0 0.0
        %1906 = vmatmul.mubr.f32.gmra.mxu0 %v1839
        %v1907 = vpop.f32.mrf.mxu0
        %v1908 = vadd.f32 %v1837, %v1907
        %v1909 = vpop.f32.mrf.mxu0
        %1910 = vdwg.mxu0
        %v1911 = vadd.f32 %v543, %v1908
        %v1912 = vsel %vm552, %v1911, 0.0
        %1913 = vadd.xlane.f32.xlu0 %v1912
        %v1914 = vpop.xlane.xlu0 %1913
        %v1915 = vrcp.pop 32.0
        %v1916 = vmul.f32 %v1914, %v1915
        %v1917 = vsub.f32 %v1911, %v1916
        %v1918 = vmul.f32 %v1917, %v1917
        %v1919 = vsel %vm552, %v1918, 0.0
        %1920 = vadd.xlane.f32.xlu0 %v1919
        %v1921 = vpop.xlane.xlu0 %1920
        %v1922 = vmul.f32 %v1921, %v1915
        %v1923 = vadd.f32 %v1922, 1e-05
        %v1924 = vrsqrt.pop %v1923
        %v1925 = vmul.f32 %v1917, %v1924
        %v1926 = vlaneseq
        %v1927 = vshrl.u32 %v1926, 7
        %v1928 = vsub.s32 0, %v1927
        %v1929 = vrot.slane %v435, %v1928
        %v1930 = vmul.f32 %v1925, %v1929
        %v1931 = vlaneseq
        %v1932 = vshrl.u32 %v1931, 7
        %v1933 = vsub.s32 0, %v1932
        %v1934 = vrot.slane %v436, %v1933
        %v1935 = vadd.f32 %v1930, %v1934
        %v1936 = vld [vmem:[#allocation9] sm:$0xff]
        %v1937 = vld [vmem:[#allocation9 + $0x8] sm:$0xff]
        %v1938 = vld [vmem:[#allocation9 + $0x10] sm:$0xff]
        %v1939 = vld [vmem:[#allocation9 + $0x18] sm:$0xff]
        %v1940 = vld [vmem:[%s6] sm:$0x1]
        %v1942 = vlaneseq
        %v1943 = vshrl.u32 %v1942, 7
        %v1944 = vsub.s32 0, %v1943
        %v1945 = vrot.slane %v1940, %v1944
        %v1948 = vsel %vm552, %v1935, 0
        %1950 = vmatprep.subr.mxu0 0.0
        %1951 = vmatpush1.msra.mxu0 0.0
        %1952 = vmatprep.subr.mxu0 0.0
        %1953 = vmatpush1.msra.mxu0 0.0
        %1954 = vmatprep.subr.mxu0 0.0
        %1955 = vmatpush1.msra.mxu0 0.0
        %1956 = vmatprep.subr.mxu0 0.0
        %1957 = vmatpush1.msra.mxu0 0.0
        %1958 = vmatprep.subr.mxu0 0.0
        %1959 = vmatpush1.msra.mxu0 0.0
        %1960 = vmatprep.subr.mxu0 0.0
        %1961 = vmatpush1.msra.mxu0 0.0
        %1962 = vmatprep.subr.mxu0 0.0
        %1963 = vmatpush1.msra.mxu0 0.0
        %1964 = vmatprep.subr.mxu0 0.0
        %1965 = vmatpush1.msra.mxu0 0.0
        %1966 = vmatprep.subr.mxu0 0.0
        %1967 = vmatpush1.msra.mxu0 0.0
        %1968 = vmatprep.subr.mxu0 0.0
        %1969 = vmatpush1.msra.mxu0 0.0
        %1970 = vmatprep.subr.mxu0 0.0
        %1971 = vmatpush1.msra.mxu0 0.0
        %1972 = vmatprep.subr.mxu0 0.0
        %1973 = vmatpush1.msra.mxu0 0.0
        %1974 = vmatprep.subr.mxu0 0.0
        %1975 = vmatpush1.msra.mxu0 %v1939
        %1976 = vmatprep.subr.mxu0 0.0
        %1977 = vmatpush1.msra.mxu0 %v1938
        %1978 = vmatprep.subr.mxu0 0.0
        %1979 = vmatpush1.msra.mxu0 %v1937
        %1980 = vmatprep.subr.mxu0 0.0
        %1981 = vmatpush1.msra.mxu0 %v1936
        %1982 = vmatprep.subr.mxu0 0.0
        %1983 = vmatpush2.msra.mxu0 0.0
        %1984 = vmatprep.subr.mxu0 0.0
        %1985 = vmatpush2.msra.mxu0 0.0
        %1986 = vmatprep.subr.mxu0 0.0
        %1987 = vmatpush2.msra.mxu0 0.0
        %1988 = vmatprep.subr.mxu0 0.0
        %1989 = vmatpush2.msra.mxu0 0.0
        %1990 = vmatprep.subr.mxu0 0.0
        %1991 = vmatpush2.msra.mxu0 0.0
        %1992 = vmatprep.subr.mxu0 0.0
        %1993 = vmatpush2.msra.mxu0 0.0
        %1994 = vmatprep.subr.mxu0 0.0
        %1995 = vmatpush2.msra.mxu0 0.0
        %1996 = vmatprep.subr.mxu0 0.0
        %1997 = vmatpush2.msra.mxu0 0.0
        %1998 = vmatprep.subr.mxu0 0.0
        %1999 = vmatpush2.msra.mxu0 0.0
        %2000 = vmatprep.subr.mxu0 0.0
        %2001 = vmatpush2.msra.mxu0 0.0
        %2002 = vmatprep.subr.mxu0 0.0
        %2003 = vmatpush2.msra.mxu0 0.0
        %2004 = vmatprep.subr.mxu0 0.0
        %2005 = vmatpush2.msra.mxu0 0.0
        %2006 = vmatprep.subr.mxu0 0.0
        %2007 = vmatpush2.msra.mxu0 0.0
        %2008 = vmatprep.subr.mxu0 0.0
        %2009 = vmatpush2.msra.mxu0 0.0
        %2010 = vmatprep.subr.mxu0 0.0
        %2011 = vmatpush2.msra.mxu0 0.0
        %2012 = vmatprep.subr.mxu0 0.0
        %2013 = vmatpush2.msra.mxu0 0.0
        %2014 = vmatprep.mubr.f32.mxu0 0.0
        %2015 = vmatmul.mubr.f32.gmra.mxu0 %v1948
        %v2016 = vpop.f32.mrf.mxu0
        %v2017 = vadd.f32 %v1945, %v2016
        %v2018 = vpop.f32.mrf.mxu0
        %2019 = vdwg.mxu0
        %v2020 = vmul.f32 %v2017, 0.5
        %v2021 = vmul.f32 %v2017, 0.70710677
        %v2022 = verf.f32.pop %v2021
        %v2023 = vadd.f32 %v2022, 1.0
        %v2024 = vmul.f32 %v2020, %v2023
        %v2025 = vld [vmem:[%s7] sm:$0xff]
        %v2026 = vld [vmem:[%s7 + $0x8] sm:$0xff]
        %v2027 = vld [vmem:[%s7 + $0x10] sm:$0xff]
        %v2028 = vld [vmem:[%s7 + $0x18] sm:$0xff]
        %v2029 = vld [vmem:[%s7 + $0x20] sm:$0xff]
        %v2030 = vld [vmem:[%s7 + $0x28] sm:$0xff]
        %v2031 = vld [vmem:[%s7 + $0x30] sm:$0xff]
        %v2032 = vld [vmem:[%s7 + $0x38] sm:$0xff]
        %v2033 = vlaneseq
        %v2034 = vshrl.u32 %v2033, 7
        %v2035 = vsub.s32 0, %v2034
        %v2036 = vrot.slane %v437, %v2035
        %vm2037 = vcmask 523264
        %v2039 = vsel %vm2037, %v2024, 0
        %2041 = vmatprep.subr.mxu0 0.0
        %2042 = vmatpush1.msra.mxu0 0.0
        %2043 = vmatprep.subr.mxu0 0.0
        %2044 = vmatpush1.msra.mxu0 0.0
        %2045 = vmatprep.subr.mxu0 0.0
        %2046 = vmatpush1.msra.mxu0 0.0
        %2047 = vmatprep.subr.mxu0 0.0
        %2048 = vmatpush1.msra.mxu0 0.0
        %2049 = vmatprep.subr.mxu0 0.0
        %2050 = vmatpush1.msra.mxu0 0.0
        %2051 = vmatprep.subr.mxu0 0.0
        %2052 = vmatpush1.msra.mxu0 0.0
        %2053 = vmatprep.subr.mxu0 0.0
        %2054 = vmatpush1.msra.mxu0 0.0
        %2055 = vmatprep.subr.mxu0 0.0
        %2056 = vmatpush1.msra.mxu0 0.0
        %2057 = vmatprep.subr.mxu0 0.0
        %2058 = vmatpush1.msra.mxu0 %v2032
        %2059 = vmatprep.subr.mxu0 0.0
        %2060 = vmatpush1.msra.mxu0 %v2031
        %2061 = vmatprep.subr.mxu0 0.0
        %2062 = vmatpush1.msra.mxu0 %v2030
        %2063 = vmatprep.subr.mxu0 0.0
        %2064 = vmatpush1.msra.mxu0 %v2029
        %2065 = vmatprep.subr.mxu0 0.0
        %2066 = vmatpush1.msra.mxu0 %v2028
        %2067 = vmatprep.subr.mxu0 0.0
        %2068 = vmatpush1.msra.mxu0 %v2027
        %2069 = vmatprep.subr.mxu0 0.0
        %2070 = vmatpush1.msra.mxu0 %v2026
        %2071 = vmatprep.subr.mxu0 0.0
        %2072 = vmatpush1.msra.mxu0 %v2025
        %2073 = vmatprep.subr.mxu0 0.0
        %2074 = vmatpush2.msra.mxu0 0.0
        %2075 = vmatprep.subr.mxu0 0.0
        %2076 = vmatpush2.msra.mxu0 0.0
        %2077 = vmatprep.subr.mxu0 0.0
        %2078 = vmatpush2.msra.mxu0 0.0
        %2079 = vmatprep.subr.mxu0 0.0
        %2080 = vmatpush2.msra.mxu0 0.0
        %2081 = vmatprep.subr.mxu0 0.0
        %2082 = vmatpush2.msra.mxu0 0.0
        %2083 = vmatprep.subr.mxu0 0.0
        %2084 = vmatpush2.msra.mxu0 0.0
        %2085 = vmatprep.subr.mxu0 0.0
        %2086 = vmatpush2.msra.mxu0 0.0
        %2087 = vmatprep.subr.mxu0 0.0
        %2088 = vmatpush2.msra.mxu0 0.0
        %2089 = vmatprep.subr.mxu0 0.0
        %2090 = vmatpush2.msra.mxu0 0.0
        %2091 = vmatprep.subr.mxu0 0.0
        %2092 = vmatpush2.msra.mxu0 0.0
        %2093 = vmatprep.subr.mxu0 0.0
        %2094 = vmatpush2.msra.mxu0 0.0
        %2095 = vmatprep.subr.mxu0 0.0
        %2096 = vmatpush2.msra.mxu0 0.0
        %2097 = vmatprep.subr.mxu0 0.0
        %2098 = vmatpush2.msra.mxu0 0.0
        %2099 = vmatprep.subr.mxu0 0.0
        %2100 = vmatpush2.msra.mxu0 0.0
        %2101 = vmatprep.subr.mxu0 0.0
        %2102 = vmatpush2.msra.mxu0 0.0
        %2103 = vmatprep.subr.mxu0 0.0
        %2104 = vmatpush2.msra.mxu0 0.0
        %2105 = vmatprep.mubr.f32.mxu0 0.0
        %2106 = vmatmul.mubr.f32.gmra.mxu0 %v2039
        %v2107 = vpop.f32.mrf.mxu0
        %v2108 = vadd.f32 %v2036, %v2107
        %v2109 = vpop.f32.mrf.mxu0
        %2110 = vdwg.mxu0
        %v2111 = vadd.f32 %v1935, %v2108
        %v2112 = vsel %vm552, %v2111, 0.0
        %2113 = vadd.xlane.f32.xlu0 %v2112
        %v2114 = vpop.xlane.xlu0 %2113
        %v2115 = vmul.f32 %v2114, %v1915
        %v2116 = vsub.f32 %v2111, %v2115
        %v2117 = vmul.f32 %v2116, %v2116
        %v2118 = vsel %vm552, %v2117, 0.0
        %2119 = vadd.xlane.f32.xlu0 %v2118
        %v2120 = vpop.xlane.xlu0 %2119
        %v2121 = vmul.f32 %v2120, %v1915
        %v2122 = vadd.f32 %v2121, 1e-05
        %v2123 = vrsqrt.pop %v2122
        %v2124 = vmul.f32 %v2116, %v2123
        %v2125 = vlaneseq
        %v2126 = vshrl.u32 %v2125, 7
        %v2127 = vsub.s32 0, %v2126
        %v2128 = vrot.slane %v438, %v2127
        %v2129 = vmul.f32 %v2124, %v2128
        %v2130 = vlaneseq
        %v2131 = vshrl.u32 %v2130, 7
        %v2132 = vsub.s32 0, %v2131
        %v2133 = vrot.slane %v439, %v2132
        %v2134 = vadd.f32 %v2129, %v2133
        %2135 = vst.msk [vmem:[%s430] sm:$0xff] %vm552, %v2134
        %s2136 = sand.u32 %s253, 1
        %s2137 = scalar_lea.sflag [#allocation6], %s2136
        %s2138 = sand.u32 %s253, 1
        %s2139 = smul.addr %s2138, 8
        %s2140 = scalar_lea.vmem [#allocation12], %s2139
        // Predicated region
        $region77: #{tpu_custom_call.1} parent=55 // pred_check
          %p2141 = pneg %p263
        $region78: #{tpu_custom_call.1} parent=55 // pred_check_branch
          %2143 = sbr.rel (%p2141) target = $region80
        $region79: #{tpu_custom_call.1} parent=55 // pred_region
          %s2145 = ssub.s32 128, 128
          %2146 = vsyncadd %s2137, %s2145
          %s2147 = sadd.s32 %s35, %s34
          %s2148 = smul.addr %s2147, 128
          %s2149 = scalar_lea.hbm %s9, %s2148
          %s2151 = sshll.u32 %s2140, 4
          %s2152 = int_to_ptr.vmem [resolvable:$true] %s2151
          %2154 = dma.vmem_to_hbm [thread:$0]  %s2152, 128, %s2149, %s2137
        $region80: #{tpu_custom_call.1} parent=55 // pred_fallthru
          _
      $region56: #{tpu_custom_call.1} parent=5 // pred_fallthru
        _
      %p2155 = scmp.le.s32.totalorder 2, %s25
      // Predicated region
      $region81: #{tpu_custom_call.1} parent=5 // pred_check
        %p2156 = pneg %p2155
      $region82: #{tpu_custom_call.1} parent=5 // pred_check_branch
        %2158 = sbr.rel (%p2156) target = $region84
      $region83: #{tpu_custom_call.1} parent=5 // pred_region
        %s2159 = ssub.s32 %s25, 2
        // Predicated region
        $region85: #{tpu_custom_call.1} parent=83 // pred_check
          %p2160 = pneg %p269
        $region86: #{tpu_custom_call.1} parent=83 // pred_check_branch
          %2162 = sbr.rel (%p2160) target = $region88
        $region87: #{tpu_custom_call.1} parent=83 // pred_region
          %s2163 = sand.u32 %s254, 1
          %s2164 = scalar_lea.sflag [#allocation6], %s2163
          %s2165 = sand.u32 %s254, 1
          %s2166 = smul.addr %s2165, 8
          %s2167 = scalar_lea.vmem [#allocation12], %s2166
          %2168 = dma.done %s2164, 128
        $region88: #{tpu_custom_call.1} parent=83 // pred_fallthru
          _
      $region84: #{tpu_custom_call.1} parent=5 // pred_fallthru
        _
    $region6: #{tpu_custom_call.1} parent=1 // loop_footer
      %s29 = sadd.s32 1, %s25
    $region7: #{tpu_custom_call.1} parent=1 // loop_footer_branch
      %24 = sbr.rel target = $region3
    $region8: #{tpu_custom_call.1} parent=1 // loop_exit
      _
    %2169 = vsyncpa [#allocation5], 1
    %s2170 = scalar_lea.sflag [#allocation5], 1
    %2171 = vsyncpa %s2170, 1
    %2172 = vsyncpa [#allocation8], 1
    %s2173 = scalar_lea.sflag [#allocation8], 1
    %2174 = vsyncpa %s2173, 1
    %2175 = vsyncpa [#allocation11], 1
    %2176 = vsyncpa [#allocation6], 1
    %s2177 = scalar_lea.sflag [#allocation6], 1
    %2178 = vsyncpa %s2177, 1

</llo_original>
